<compile_context>
chip_gen: v5e
topology: v5e:2x2
jax: 0.10.0
libtpu: 0.0.40
codegen_flags: <defaults>
</compile_context>

<pallas_src>
import functools

import numpy as np
import jax
import jax.numpy as jnp
from jax.experimental import pallas as pl
from jax.experimental.pallas import tpu as pltpu

FEAT3D_DIM = 8           # stand-in for hyp.feat3D_dim
HIDDEN = 128             # nn.Conv3d(..., out_channels=128, kernel_size=1)
REJECT3D_CE_COEFF = 1.0  # stand-in for hyp.reject3D_ce_coeff
EPS = 1e-6               # utils_basic.EPS used by reduce_masked_mean

TN_MAX = 8192            # max voxels per grid step (per branch)
CH_TARGET = 512          # voxels per branch per in-kernel chunk


# ---------------------------------------------------------------------------
# Pallas kernel: fused diff + pointwise MLP (both branches) + sigmoid +
# masked BCE partial sums.
# ---------------------------------------------------------------------------
def _rejectnet_kernel(f1s_ref, f1_ref, f0_ref, valid_ref, w1t_ref, b1_ref,
                      b2_ref, sig_ref, lsum_ref, *, npos_pad, ch, n_chunks):
    j = pl.program_id(2)          # voxel-tile index (reduction axis for lsum)

    @pl.when(j == 0)
    def _zero():
        lsum_ref[...] = jnp.zeros_like(lsum_ref)

    w1t = w1t_ref[...]            # (H_PAD, C) bf16, |w2| folded in, sign-sorted
    b1 = b1_ref[...]              # (H_PAD, 1) f32, |w2| folded in
    b2 = b2_ref[0]                # scalar (SMEM)
    h_pad = w1t.shape[0]

    acc = jnp.zeros((2, ch), jnp.float32)     # row 0: pos-loss, row 1: neg-loss

    # Static chunk loop: keeps the (H_PAD, 2*ch) hidden tensor ~0.5 MiB so it
    # never round-trips a huge VMEM buffer; offsets are compile-time constants.
    for ci in range(n_chunks):
        lo, hi = ci * ch, (ci + 1) * ch
        f0c = f0_ref[0, :, lo:hi]                                   # (C, ch) f32
        xpos = (f1s_ref[0, :, lo:hi] - f0c).astype(jnp.bfloat16)    # pos branch
        xneg = (f1_ref[0, :, lo:hi] - f0c).astype(jnp.bfloat16)     # neg branch
        x2 = jnp.concatenate([xpos, xneg], axis=-1)                 # (C, 2*ch)

        # conv1 (1x1x1): one bf16 MXU matmul feeding both branches, f32 acc.
        h = jnp.dot(w1t, x2, preferred_element_type=jnp.float32)    # (H_PAD,2ch)
        h = jnp.maximum(h + b1, 0.0)

        # conv2 (1x1x1): |w2| already folded into h, so the 1-channel output is
        # (sum over positive-sign rows) - (sum over negative-sign rows) + b2.
        spos = (jnp.sum(h[:npos_pad], axis=0, keepdims=True)
                if npos_pad > 0 else jnp.zeros((1, 2 * ch), jnp.float32))
        sneg = (jnp.sum(h[npos_pad:], axis=0, keepdims=True)
                if npos_pad < h_pad else jnp.zeros((1, 2 * ch), jnp.float32))
        logit = spos - sneg + b2                                    # (1, 2*ch)

        # stable sigmoid + BCE-with-logits sharing one exp / one log / one recip
        e = jnp.exp(-jnp.abs(logit))
        one_plus_e = 1.0 + e
        inv = pl.reciprocal(one_plus_e, approx=True)   # sig is visualization-only
        sig = jnp.where(logit >= 0.0, inv, e * inv)                 # (1, 2*ch)
        sig_ref[0, :, lo:hi] = jnp.concatenate(
            [sig[:, :ch], sig[:, ch:]], axis=0).astype(sig_ref.dtype)

        # BCEWithLogitsLoss(reduction='none'): max(x,0) - x*t + log(1+exp(-|x|))
        base = jnp.maximum(logit, 0.0) + jnp.log(one_plus_e)
        lpos = base[:, :ch] - logit[:, :ch]           # target = 1 (pos branch)
        lneg = base[:, ch:]                           # target = 0 (neg branch)
        v = valid_ref[0, :, lo:hi]                    # valid1_shuf mask (1, ch)
        acc = acc + jnp.concatenate([lpos, lneg], axis=0) * v

    lsum_ref[0, 0, :, :] += acc


def rejectnet_fused(f1_shuf, f1, f0, valid, w1t, b1, b2, *, tn, ch, npos_pad):
    """Run both (pos, neg) MLP branches in one pallas_call.

    f1_shuf, f1, f0: (B, C, Nt) f32   valid: (B, 1, Nt) f32 (valid1_shuf)
    w1t: (H_PAD, C) bf16 (|w2|-folded, sign-sorted)   b1: (H_PAD, 1) f32   b2: (1,)
    Returns:
      sig : (B, 2, Nt) bf16   row 0 = pos-branch sigmoid, row 1 = neg-branch
      lsum: (B, S, 2, ch) f32 lane-wise partial sums of (loss * valid)
    """
    B, C, n_total = f1.shape
    h_pad = w1t.shape[0]
    nj = n_total // tn
    # v7x has 2 TensorCores: make sure the 'parallel' extent is even / >= 2.
    s_split = 2 if (B % 2 == 1 and nj % 2 == 0) else 1
    nj_per = nj // s_split

    kernel = functools.partial(_rejectnet_kernel, npos_pad=npos_pad, ch=ch,
                               n_chunks=tn // ch)

    vox = lambda b, s, j: (b, 0, s * nj_per + j)
    grid_spec = pltpu.PrefetchScalarGridSpec(
        num_scalar_prefetch=0,
        grid=(B, s_split, nj_per),
        in_specs=[
            pl.BlockSpec((1, C, tn), vox),                      # feat1_shuf
            pl.BlockSpec((1, C, tn), vox),                      # feat1
            pl.BlockSpec((1, C, tn), vox),                      # feat0 (shared)
            pl.BlockSpec((1, 1, tn), vox),                      # valid1_shuf
            pl.BlockSpec((h_pad, C), lambda b, s, j: (0, 0)),   # W1' (folded)
            pl.BlockSpec((h_pad, 1), lambda b, s, j: (0, 0)),   # b1' (folded)
            pl.BlockSpec(memory_space=pltpu.MemorySpace.SMEM),  # b2 scalar
        ],
        out_specs=(
            pl.BlockSpec((1, 2, tn), vox),                            # sigmoid
            pl.BlockSpec((1, 1, 2, ch), lambda b, s, j: (b, s, 0, 0)),  # loss acc
        ),
    )
    out_shapes = (
        jax.ShapeDtypeStruct((B, 2, n_total), jnp.bfloat16),
        jax.ShapeDtypeStruct((B, s_split, 2, ch), jnp.float32),
    )
    n_bvox = 2 * B * n_total      # branch-voxels
    cost = pl.CostEstimate(
        flops=2 * h_pad * C * n_bvox + 8 * h_pad * n_bvox,
        transcendentals=2 * n_bvox,
        bytes_accessed=(3 * B * C * n_total + B * n_total) * 4
                       + B * 2 * n_total * 2 + B * s_split * 2 * ch * 4,
    )
    return pl.pallas_call(
        kernel,
        out_shape=out_shapes,
        grid_spec=grid_spec,
        compiler_params=pltpu.CompilerParams(
            dimension_semantics=("parallel", "parallel", "arbitrary")),
        cost_estimate=cost,
    )(f1_shuf, f1, f0, valid, w1t, b1, b2)


# ---------------------------------------------------------------------------
# Parameter construction (mimics the two Conv3d layers) + host-side folding
# ---------------------------------------------------------------------------
def init_params(key, c_in):
    k1, k2, k3, k4 = jax.random.split(key, 4)
    s1 = 1.0 / jnp.sqrt(jnp.float32(c_in))
    s2 = 1.0 / jnp.sqrt(jnp.float32(HIDDEN))
    # torch conv1 weight [128, C, 1, 1, 1] -> (128, C); conv2 [1, 128, ...] -> (128, 1)
    w1t = jax.random.uniform(k1, (HIDDEN, c_in), jnp.float32, -s1, s1)
    b1 = jax.random.uniform(k2, (HIDDEN, 1), jnp.float32, -s1, s1)
    w2 = jax.random.uniform(k3, (HIDDEN, 1), jnp.float32, -s2, s2)
    b2 = jax.random.uniform(k4, (1,), jnp.float32, -s2, s2)
    return w1t, b1, w2, b2


def prep_params(params):
    """Fold |w2| into W1/b1, sort hidden rows by sign(w2), pad each sign group
    to a multiple of 8 rows (zero rows contribute nothing through ReLU)."""
    w1t, b1, w2, b2 = (np.asarray(p, np.float32) for p in params)
    c_in = w1t.shape[1]
    w2f = w2[:, 0]
    pos_idx = np.nonzero(w2f > 0)[0]
    neg_idx = np.nonzero(w2f <= 0)[0]
    npos, nneg = len(pos_idx), len(neg_idx)
    npos_pad = int(-(-npos // 8) * 8)
    nneg_pad = int(-(-nneg // 8) * 8)
    h_pad = npos_pad + nneg_pad
    w1t_f = np.zeros((h_pad, c_in), np.float32)
    b1_f = np.zeros((h_pad, 1), np.float32)
    absw2 = np.abs(w2f)
    w1t_f[:npos] = w1t[pos_idx] * absw2[pos_idx, None]
    b1_f[:npos] = b1[pos_idx] * absw2[pos_idx, None]
    w1t_f[npos_pad:npos_pad + nneg] = w1t[neg_idx] * absw2[neg_idx, None]
    b1_f[npos_pad:npos_pad + nneg] = b1[neg_idx] * absw2[neg_idx, None]
    return (jnp.asarray(w1t_f, jnp.bfloat16), jnp.asarray(b1_f, jnp.float32),
            jnp.asarray(b2, jnp.float32), npos_pad)


# ---------------------------------------------------------------------------
# Forward pass (mirrors RejectNet3D.forward)
# ---------------------------------------------------------------------------
def rejectnet3d_forward(feat0, feat1, valid0, valid1, perm, w1t_f, b1_f, b2,
                        *, npos_pad):
    B, C, D, H, W = feat0.shape
    N = D * H * W

    f0 = feat0.reshape(B, C, N)
    f1 = feat1.reshape(B, C, N)
    v1 = valid1.reshape(B, 1, N)
    # TODO(synk): torch uses np.random.permutation at call time; here the
    # permutation is supplied deterministically by the caller.
    f1_shuf = f1[:, :, perm]
    v1_shuf = v1[:, :, perm]
    # NOTE: the reference computes neg_valid = valid0*valid1 but never uses it
    # (both losses are masked with pos_valid == valid1_shuf); reproduced here,
    # so valid0 is intentionally unused.

    # Tile sizing: prefer a tn that divides the 128-aligned voxel count so no
    # feature padding (extra HBM round trips) is needed.
    n_lane = ((N + 127) // 128) * 128
    if n_lane <= TN_MAX:
        tn, n_total = n_lane, n_lane
    else:
        tn = next((c for c in range(TN_MAX, 2047, -128) if n_lane % c == 0), None)
        if tn is None:                               # fallback: pad to TN_MAX
            tn = TN_MAX
            n_total = ((N + TN_MAX - 1) // TN_MAX) * TN_MAX
        else:
            n_total = n_lane
    pad = n_total - N
    if pad:
        f0 = jnp.pad(f0, ((0, 0), (0, 0), (0, pad)))
        f1 = jnp.pad(f1, ((0, 0), (0, 0), (0, pad)))
        f1_shuf = jnp.pad(f1_shuf, ((0, 0), (0, 0), (0, pad)))
        v_mask = jnp.pad(v1_shuf, ((0, 0), (0, 0), (0, pad)))  # pad valid with 0
    else:
        v_mask = v1_shuf
    ch = next(c for c in range(min(tn, CH_TARGET), 127, -128) if tn % c == 0)

    sig, lsum = rejectnet_fused(f1_shuf, f1, f0, v_mask, w1t_f, b1_f, b2,
                                tn=tn, ch=ch, npos_pad=npos_pad)

    pos_sig = sig[:, 0, :N].astype(jnp.float32).reshape(B, 1, D, H, W)
    neg_sig = sig[:, 1, :N].astype(jnp.float32).reshape(B, 1, D, H, W)

    # utils_basic.reduce_masked_mean over all elements; the reference masks the
    # neg loss with pos_valid (valid1_shuf) too — reproduced exactly.
    denom = jnp.sum(v1) + EPS
    pos_loss = jnp.sum(lsum[..., 0, :]) / denom
    neg_loss = jnp.sum(lsum[..., 1, :]) / denom

    ce_loss = pos_loss + neg_loss
    total_loss = jnp.float32(0.0) + REJECT3D_CE_COEFF * ce_loss
    # TODO(synk): summ_writer visualization calls have no Pallas equivalent.
    return total_loss, neg_sig, pos_sig


# ---------------------------------------------------------------------------
# Pure-JAX reference (unfolded f32 weights) for a correctness sanity check
# ---------------------------------------------------------------------------
def _reference_forward(feat0, feat1, valid1, params, perm):
    w1t, b1, w2, b2 = params
    B, C, D, H, W = feat0.shape
    N = D * H * W
    f0 = feat0.reshape(B, C, N)
    f1 = feat1.reshape(B, C, N)
    v1 = valid1.reshape(B, 1, N)
    f1s = f1[:, :, perm]
    v1s = v1[:, :, perm]

    def net(x):
        h = jnp.maximum(jnp.einsum('hc,bcn->bhn', w1t, x) + b1[None], 0.0)
        return jnp.einsum('h,bhn->bn', w2[:, 0], h) + b2[0]

    pos_logit = net(f1s - f0)
    neg_logit = net(f1 - f0)

    def bce(x, t):
        return jnp.maximum(x, 0.0) - x * t + jnp.log1p(jnp.exp(-jnp.abs(x)))

    pv = v1s.reshape(B, N)
    denom = jnp.sum(pv) + EPS
    pos_loss = jnp.sum(bce(pos_logit, 1.0) * pv) / denom
    neg_loss = jnp.sum(bce(neg_logit, 0.0) * pv) / denom
    total = REJECT3D_CE_COEFF * (pos_loss + neg_loss)
    pos_sig = jax.nn.sigmoid(pos_logit).reshape(B, 1, D, H, W)
    neg_sig = jax.nn.sigmoid(neg_logit).reshape(B, 1, D, H, W)
    return total, neg_sig, pos_sig


# ---------------------------------------------------------------------------
if __name__ == "__main__":
    key = jax.random.PRNGKey(0)
    kf0, kf1, kv0, kv1, kperm, kparam = jax.random.split(key, 6)

    B, C, D, H, W = 2, FEAT3D_DIM, 8, 8, 8
    feat0 = jax.random.normal(kf0, (B, C, D, H, W), jnp.float32)
    feat1 = jax.random.normal(kf1, (B, C, D, H, W), jnp.float32)
    valid0 = (jax.random.uniform(kv0, (B, 1, D, H, W)) > 0.3).astype(jnp.float32)
    valid1 = (jax.random.uniform(kv1, (B, 1, D, H, W)) > 0.3).astype(jnp.float32)
    perm = jax.random.permutation(kperm, D * H * W)

    raw_params = init_params(kparam, C)
    w1t_f, b1_f, b2, npos_pad = prep_params(raw_params)

    fwd = jax.jit(functools.partial(rejectnet3d_forward, npos_pad=npos_pad))
    total_loss, neg_sig, pos_sig = fwd(feat0, feat1, valid0, valid1, perm,
                                       w1t_f, b1_f, b2)
    jax.block_until_ready((total_loss, neg_sig, pos_sig))

    assert neg_sig.shape == (B, 1, D, H, W)
    assert pos_sig.shape == (B, 1, D, H, W)
    assert total_loss.shape == ()

    # Sanity check vs. the unfolded f32 reference (bf16 matmul + approx recip
    # give small, bounded error).
    ref_loss, ref_neg, ref_pos = _reference_forward(feat0, feat1, valid1,
                                                    raw_params, perm)
    assert abs(float(total_loss) - float(ref_loss)) <= 3e-2 * max(
        1.0, abs(float(ref_loss))), (float(total_loss), float(ref_loss))
    assert float(jnp.max(jnp.abs(neg_sig - ref_neg))) < 4e-2
    assert float(jnp.max(jnp.abs(pos_sig - ref_pos))) < 4e-2

    print("KERNEL_OK")
</pallas_src>

<mosaic_0001>
module attributes {stable_mosaic.version = 11 : i64} {
  func.func @_rejectnet_kernel(%arg0: i32, %arg1: i32, %arg2: i32, %arg3: memref<1x8x512xf32, #tpu.memory_space<vmem>>, %arg4: memref<1x8x512xf32, #tpu.memory_space<vmem>>, %arg5: memref<1x8x512xf32, #tpu.memory_space<vmem>>, %arg6: memref<1x1x512xf32, #tpu.memory_space<vmem>>, %arg7: memref<136x8xbf16, #tpu.memory_space<vmem>>, %arg8: memref<136x1xf32, #tpu.memory_space<vmem>>, %arg9: memref<1xf32, #tpu.memory_space<smem>>, %arg10: memref<1x2x512xbf16, #tpu.memory_space<vmem>>, %arg11: memref<1x1x2x512xf32, #tpu.memory_space<vmem>>) attributes {dimension_semantics = [#tpu.dimension_semantics<parallel>, #tpu.dimension_semantics<parallel>, #tpu.dimension_semantics<arbitrary>], iteration_bounds = array<i64: 2, 1, 1>, scalar_prefetch = 0 : i64, scratch_operands = 0 : i64, tpu.core_type = #tpu.core_type<tc>, window_params = [{transform_indices = @transform_0, window_bounds = array<i64: 1, 8, 512>}, {transform_indices = @transform_1, window_bounds = array<i64: 1, 8, 512>}, {transform_indices = @transform_2, window_bounds = array<i64: 1, 8, 512>}, {transform_indices = @transform_3, window_bounds = array<i64: 1, 1, 512>}, {pipeline_mode = #tpu.pipeline_mode<synchronous>, transform_indices = @transform_4, window_bounds = array<i64: 136, 8>}, {pipeline_mode = #tpu.pipeline_mode<synchronous>, transform_indices = @transform_5, window_bounds = array<i64: 136, 1>}, {transform_indices = @transform_6, window_bounds = array<i64: 1>}, {transform_indices = @transform_7, window_bounds = array<i64: 1, 2, 512>}, {transform_indices = @transform_8, window_bounds = array<i64: 1, 1, 2, 512>}]} {
    %c0_i32 = arith.constant 0 : i32
    %0 = arith.cmpi eq, %arg2, %c0_i32 : i32
    %1 = arith.extui %0 : i1 to i32
    %c0_i32_0 = arith.constant 0 : i32
    %2 = arith.cmpi ne, %1, %c0_i32_0 : i32
    scf.if %2 {
      %cst_36 = arith.constant 0.000000e+00 : f32
      %70 = vector.broadcast %cst_36 : f32 to vector<1x1x2x512xf32>
      %c0_37 = arith.constant 0 : index
      %c0_38 = arith.constant 0 : index
      %c0_39 = arith.constant 0 : index
      %c0_40 = arith.constant 0 : index
      %71 = vector.load %arg11[%c0_37, %c0_38, %c0_39, %c0_40] : memref<1x1x2x512xf32, #tpu.memory_space<vmem>>, vector<1x1x2x512xf32>
      tpu.vector_store %arg11[%c0_37, %c0_38, %c0_39, %c0_40], %70 {strides = array<i32>} : memref<1x1x2x512xf32, #tpu.memory_space<vmem>>, vector<1x1x2x512xf32>,
    } else {
    }
    %c0 = arith.constant 0 : index
    %c0_1 = arith.constant 0 : index
    %3 = vector.load %arg7[%c0, %c0_1] : memref<136x8xbf16, #tpu.memory_space<vmem>>, vector<136x8xbf16>
    %c0_2 = arith.constant 0 : index
    %c0_3 = arith.constant 0 : index
    %4 = vector.load %arg8[%c0_2, %c0_3] : memref<136x1xf32, #tpu.memory_space<vmem>>, vector<136x1xf32>
    %c0_4 = arith.constant 0 : index
    %5 = memref.load %arg9[%c0_4] : memref<1xf32, #tpu.memory_space<smem>>
    %cst = arith.constant 0.000000e+00 : f32
    %6 = vector.broadcast %cst : f32 to vector<2x512xf32>
    %c0_5 = arith.constant 0 : index
    %c0_6 = arith.constant 0 : index
    %c0_7 = arith.constant 0 : index
    %7 = vector.load %arg5[%c0_5, %c0_6, %c0_7] : memref<1x8x512xf32, #tpu.memory_space<vmem>>, vector<1x8x512xf32>
    %8 = vector.shape_cast %7 : vector<1x8x512xf32> to vector<8x512xf32>
    %c0_8 = arith.constant 0 : index
    %c0_9 = arith.constant 0 : index
    %c0_10 = arith.constant 0 : index
    %9 = vector.load %arg3[%c0_8, %c0_9, %c0_10] : memref<1x8x512xf32, #tpu.memory_space<vmem>>, vector<1x8x512xf32>
    %10 = vector.shape_cast %9 : vector<1x8x512xf32> to vector<8x512xf32>
    %11 = arith.subf %10, %8 : vector<8x512xf32>
    %12 = arith.truncf %11 : vector<8x512xf32> to vector<8x512xbf16>
    %c0_11 = arith.constant 0 : index
    %c0_12 = arith.constant 0 : index
    %c0_13 = arith.constant 0 : index
    %13 = vector.load %arg4[%c0_11, %c0_12, %c0_13] : memref<1x8x512xf32, #tpu.memory_space<vmem>>, vector<1x8x512xf32>
    %14 = vector.shape_cast %13 : vector<1x8x512xf32> to vector<8x512xf32>
    %15 = arith.subf %14, %8 : vector<8x512xf32>
    %16 = arith.truncf %15 : vector<8x512xf32> to vector<8x512xbf16>
    %17 = tpu.concatenate %12, %16 in 1 : vector<8x512xbf16>, vector<8x512xbf16> -> vector<8x1024xbf16>
    %cst_14 = arith.constant dense<0.000000e+00> : vector<136x1024xf32>
    %18 = tpu.matmul %3, %17, %cst_14 {dimension_numbers = #tpu.dot_dimension_numbers<[1], [0], [0], [1], [0, 0, 1, 1], [], []>} : vector<136x8xbf16>, vector<8x1024xbf16>, vector<136x1024xf32> -> vector<136x1024xf32>
    %19 = vector.broadcast %4 : vector<136x1xf32> to vector<136x1024xf32>
    %20 = arith.addf %18, %19 : vector<136x1024xf32>
    %cst_15 = arith.constant 0.000000e+00 : f32
    %21 = vector.broadcast %cst_15 : f32 to vector<136x1024xf32>
    %22 = arith.maximumf %20, %21 : vector<136x1024xf32>
    %23 = vector.extract_strided_slice %22 {offsets = [0, 0], sizes = [72, 1024], strides = [1, 1]} : vector<136x1024xf32> to vector<72x1024xf32>
    %cst_16 = arith.constant dense<0.000000e+00> : vector<1024xf32>
    %24 = vector.multi_reduction <add>, %23, %cst_16 [0] : vector<72x1024xf32> to vector<1024xf32>
    %25 = vector.shape_cast %24 : vector<1024xf32> to vector<1x1024xf32>
    %26 = vector.extract_strided_slice %22 {offsets = [72, 0], sizes = [64, 1024], strides = [1, 1]} : vector<136x1024xf32> to vector<64x1024xf32>
    %cst_17 = arith.constant dense<0.000000e+00> : vector<1024xf32>
    %27 = vector.multi_reduction <add>, %26, %cst_17 [0] : vector<64x1024xf32> to vector<1024xf32>
    %28 = vector.shape_cast %27 : vector<1024xf32> to vector<1x1024xf32>
    %29 = arith.subf %25, %28 : vector<1x1024xf32>
    %30 = vector.broadcast %5 : f32 to vector<1x1024xf32>
    %31 = arith.addf %29, %30 : vector<1x1024xf32>
    %32 = math.absf %31 : vector<1x1024xf32>
    %cst_18 = arith.constant 0.000000e+00 : f32
    %33 = vector.broadcast %cst_18 : f32 to vector<1x1024xf32>
    %34 = arith.subf %33, %32 : vector<1x1024xf32>
    %35 = math.exp %34 : vector<1x1024xf32>
    %cst_19 = arith.constant 1.000000e+00 : f32
    %36 = vector.broadcast %cst_19 : f32 to vector<1x1024xf32>
    %37 = arith.addf %36, %35 : vector<1x1024xf32>
    %38 = tpu.reciprocal %37 {approx = true} : vector<1x1024xf32> -> vector<1x1024xf32>
    %cst_20 = arith.constant 0.000000e+00 : f32
    %39 = vector.broadcast %cst_20 : f32 to vector<1x1024xf32>
    %40 = arith.cmpf oge, %31, %39 : vector<1x1024xf32>
    %41 = arith.mulf %35, %38 : vector<1x1024xf32>
    %42 = arith.select %40, %38, %41 : vector<1x1024xi1>, vector<1x1024xf32>
    %43 = vector.extract_strided_slice %42 {offsets = [0, 0], sizes = [1, 512], strides = [1, 1]} : vector<1x1024xf32> to vector<1x512xf32>
    %44 = vector.extract_strided_slice %42 {offsets = [0, 512], sizes = [1, 512], strides = [1, 1]} : vector<1x1024xf32> to vector<1x512xf32>
    %45 = tpu.concatenate %43, %44 in 0 : vector<1x512xf32>, vector<1x512xf32> -> vector<2x512xf32>
    %46 = arith.truncf %45 : vector<2x512xf32> to vector<2x512xbf16>
    %c0_21 = arith.constant 0 : index
    %c0_22 = arith.constant 0 : index
    %c0_23 = arith.constant 0 : index
    %47 = vector.load %arg10[%c0_21, %c0_22, %c0_23] : memref<1x2x512xbf16, #tpu.memory_space<vmem>>, vector<1x2x512xbf16>
    %48 = vector.shape_cast %47 : vector<1x2x512xbf16> to vector<2x512xbf16>
    %49 = vector.shape_cast %46 : vector<2x512xbf16> to vector<1x2x512xbf16>
    tpu.vector_store %arg10[%c0_21, %c0_22, %c0_23], %49 {strides = array<i32>} : memref<1x2x512xbf16, #tpu.memory_space<vmem>>, vector<1x2x512xbf16>,
    %cst_24 = arith.constant 0.000000e+00 : f32
    %50 = vector.broadcast %cst_24 : f32 to vector<1x1024xf32>
    %51 = arith.maximumf %31, %50 : vector<1x1024xf32>
    %52 = math.log %37 : vector<1x1024xf32>
    %53 = arith.addf %51, %52 : vector<1x1024xf32>
    %54 = vector.extract_strided_slice %53 {offsets = [0, 0], sizes = [1, 512], strides = [1, 1]} : vector<1x1024xf32> to vector<1x512xf32>
    %55 = vector.extract_strided_slice %31 {offsets = [0, 0], sizes = [1, 512], strides = [1, 1]} : vector<1x1024xf32> to vector<1x512xf32>
    %56 = arith.subf %54, %55 : vector<1x512xf32>
    %57 = vector.extract_strided_slice %53 {offsets = [0, 512], sizes = [1, 512], strides = [1, 1]} : vector<1x1024xf32> to vector<1x512xf32>
    %c0_25 = arith.constant 0 : index
    %c0_26 = arith.constant 0 : index
    %c0_27 = arith.constant 0 : index
    %58 = vector.load %arg6[%c0_25, %c0_26, %c0_27] : memref<1x1x512xf32, #tpu.memory_space<vmem>>, vector<1x1x512xf32>
    %59 = vector.shape_cast %58 : vector<1x1x512xf32> to vector<1x512xf32>
    %60 = tpu.concatenate %56, %57 in 0 : vector<1x512xf32>, vector<1x512xf32> -> vector<2x512xf32>
    %61 = vector.broadcast %59 : vector<1x512xf32> to vector<2x512xf32>
    %62 = arith.mulf %60, %61 : vector<2x512xf32>
    %63 = arith.addf %6, %62 : vector<2x512xf32>
    %c0_28 = arith.constant 0 : index
    %c0_29 = arith.constant 0 : index
    %c0_30 = arith.constant 0 : index
    %c0_31 = arith.constant 0 : index
    %64 = vector.load %arg11[%c0_28, %c0_29, %c0_30, %c0_31] : memref<1x1x2x512xf32, #tpu.memory_space<vmem>>, vector<1x1x2x512xf32>
    %65 = vector.shape_cast %64 : vector<1x1x2x512xf32> to vector<2x512xf32>
    %66 = arith.addf %65, %63 : vector<2x512xf32>
    %c0_32 = arith.constant 0 : index
    %c0_33 = arith.constant 0 : index
    %c0_34 = arith.constant 0 : index
    %c0_35 = arith.constant 0 : index
    %67 = vector.load %arg11[%c0_32, %c0_33, %c0_34, %c0_35] : memref<1x1x2x512xf32, #tpu.memory_space<vmem>>, vector<1x1x2x512xf32>
    %68 = vector.shape_cast %67 : vector<1x1x2x512xf32> to vector<2x512xf32>
    %69 = vector.shape_cast %66 : vector<2x512xf32> to vector<1x1x2x512xf32>
    tpu.vector_store %arg11[%c0_32, %c0_33, %c0_34, %c0_35], %69 {strides = array<i32>} : memref<1x1x2x512xf32, #tpu.memory_space<vmem>>, vector<1x1x2x512xf32>,
    return
  }
  func.func @transform_0(%arg0: i32, %arg1: i32, %arg2: i32) -> (i32, i32, i32) {
    %c1_i32 = arith.constant 1 : i32
    %0 = arith.muli %arg1, %c1_i32 : i32
    %1 = arith.addi %0, %arg2 : i32
    %c0_i32 = arith.constant 0 : i32
    %c0_i32_0 = arith.constant 0 : i32
    return %arg0, %c0_i32, %1 : i32, i32, i32
  }
  func.func @transform_1(%arg0: i32, %arg1: i32, %arg2: i32) -> (i32, i32, i32) {
    %c1_i32 = arith.constant 1 : i32
    %0 = arith.muli %arg1, %c1_i32 : i32
    %1 = arith.addi %0, %arg2 : i32
    %c0_i32 = arith.constant 0 : i32
    %c0_i32_0 = arith.constant 0 : i32
    return %arg0, %c0_i32, %1 : i32, i32, i32
  }
  func.func @transform_2(%arg0: i32, %arg1: i32, %arg2: i32) -> (i32, i32, i32) {
    %c1_i32 = arith.constant 1 : i32
    %0 = arith.muli %arg1, %c1_i32 : i32
    %1 = arith.addi %0, %arg2 : i32
    %c0_i32 = arith.constant 0 : i32
    %c0_i32_0 = arith.constant 0 : i32
    return %arg0, %c0_i32, %1 : i32, i32, i32
  }
  func.func @transform_3(%arg0: i32, %arg1: i32, %arg2: i32) -> (i32, i32, i32) {
    %c1_i32 = arith.constant 1 : i32
    %0 = arith.muli %arg1, %c1_i32 : i32
    %1 = arith.addi %0, %arg2 : i32
    %c0_i32 = arith.constant 0 : i32
    %c0_i32_0 = arith.constant 0 : i32
    return %arg0, %c0_i32, %1 : i32, i32, i32
  }
  func.func @transform_4(%arg0: i32, %arg1: i32, %arg2: i32) -> (i32, i32) {
    %c0_i32 = arith.constant 0 : i32
    %c0_i32_0 = arith.constant 0 : i32
    %c0_i32_1 = arith.constant 0 : i32
    return %c0_i32, %c0_i32_0 : i32, i32
  }
  func.func @transform_5(%arg0: i32, %arg1: i32, %arg2: i32) -> (i32, i32) {
    %c0_i32 = arith.constant 0 : i32
    %c0_i32_0 = arith.constant 0 : i32
    %c0_i32_1 = arith.constant 0 : i32
    return %c0_i32, %c0_i32_0 : i32, i32
  }
  func.func @transform_6(%arg0: i32, %arg1: i32, %arg2: i32) -> i32 {
    %c0_i32 = arith.constant 0 : i32
    %c0_i32_0 = arith.constant 0 : i32
    return %c0_i32 : i32
  }
  func.func @transform_7(%arg0: i32, %arg1: i32, %arg2: i32) -> (i32, i32, i32) {
    %c1_i32 = arith.constant 1 : i32
    %0 = arith.muli %arg1, %c1_i32 : i32
    %1 = arith.addi %0, %arg2 : i32
    %c0_i32 = arith.constant 0 : i32
    %c0_i32_0 = arith.constant 0 : i32
    return %arg0, %c0_i32, %1 : i32, i32, i32
  }
  func.func @transform_8(%arg0: i32, %arg1: i32, %arg2: i32) -> (i32, i32, i32, i32) {
    %c0_i32 = arith.constant 0 : i32
    %c0_i32_0 = arith.constant 0 : i32
    %c0_i32_1 = arith.constant 0 : i32
    return %arg0, %arg1, %c0_i32, %c0_i32_0 : i32, i32, i32, i32
  }
}

</mosaic_0001>

<llo_original>
// kernel: rejectnet3d_forward.1
$region0: #{rejectnet3d_forward.1}
  #allocation0 [shape = 'u32[]', space=smem, size = 0x4, offset = 0x4, fixed_abs, tag = 'smem constant byte address 0x4 - core index']
  #allocation1 [shape = 'u32[72,128]{1,0:T(1,128)}', space=vmem, size = 0x9000, scoped, tag = 'internal scratch']
  #allocation2 [shape = 'f32[1]{0:T(128)S(6)}', space=smem, size = 0x200, scoped, tag = 'scoped memory for rejectnet3d_forward.1']
  %s0 = inlined_call_operand.vmem [shape: f32[2,8,512], index: 0, kind: input, shape index: {}]
  %s1 = inlined_call_operand.vmem [shape: f32[2,8,512], index: 1, kind: input, shape index: {}]
  %s2 = inlined_call_operand.vmem [shape: f32[2,8,512], index: 2, kind: input, shape index: {}]
  %s3 = inlined_call_operand.vmem [shape: f32[2,1,512], index: 3, kind: input, shape index: {}]
  %s4 = inlined_call_operand.vmem [shape: bf16[136,8], index: 4, kind: input, shape index: {}]
  %s5 = inlined_call_operand.vmem [shape: f32[136,1], index: 5, kind: input, shape index: {}]
  %s6 = inlined_call_operand.<no memory space> [shape: f32[1], index: 6, kind: input, shape index: {}]
  %s7 = inlined_call_operand.vmem [shape: bf16[2,2,512], index: 7, kind: output, shape index: {0}]
  %s8 = inlined_call_operand.vmem [shape: f32[2,1,2,512], index: 8, kind: output, shape index: {1}]
  %9 = xla_tuple %s7, %s8
  %s10 = sld [smem:[#allocation0]]
  $region73: #{rejectnet3d_forward.1} parent=0
    _
  %s12 = ssub.s32 1, %s10
  %s13 = scalar_select 0, %s12, %s10
  %14 = sst [smem:[#allocation2]] %s6
  loop: start=0, step=1, limit=4
  $region2: #{rejectnet3d_forward.1} parent=0 // loop_pre_header
    _
  $region3: #{rejectnet3d_forward.1} parent=0 // loop_header
    %s16 = sphi 0, %s20
    %p17 = scmp.ge.s32.totalorder %s16, 4
    %s23 = sphi 0, %s42
    %s24 = sphi 0, %s38
    %s25 = sphi 0, %s34
    %s26 = sphi 0, %s23
    %s27 = sphi 0, %s24
    %s28 = sphi 0, %s25
    %s29 = sphi 0, %s26
    %s30 = sphi 0, %s27
    %s31 = sphi 0, %s28
    %s49 = sphi 0, %s51
    %s52 = sphi 0, %s49
    %s53 = sphi 0, %s52
    %s69 = sphi 0, %s53
    %s79 = sphi 0, %s81
    %s82 = sphi 0, %s79
    %s83 = sphi 0, %s82
    %s99 = sphi 0, %s83
    %s109 = sphi 0, %s111
    %s112 = sphi 0, %s109
    %s113 = sphi 0, %s112
    %s129 = sphi 0, %s113
    %s139 = sphi 0, %s141
    %s142 = sphi 0, %s139
    %s143 = sphi 0, %s142
    %s159 = sphi 0, %s143
    %s163 = sphi 0, %s163
    %s165 = sphi 0, %s163
    %s166 = sphi 0, %s165
    %s180 = sphi 0, %s166
    %s184 = sphi 0, %s184
    %s186 = sphi 0, %s184
    %s187 = sphi 0, %s186
    %s201 = sphi 0, %s187
    %s205 = sphi 0, %s205
    %s207 = sphi 0, %s205
    %s208 = sphi 0, %s207
    %s222 = sphi 0, %s208
    %s232 = sphi 0, %s234
    %s235 = sphi 0, %s232
    %s236 = sphi 0, %s235
    %s252 = sphi 0, %s236
    %s260 = sphi 0, %s262
    %s263 = sphi 0, %s260
    %s264 = sphi 0, %s263
    %s280 = sphi 0, %s264
  $region4: #{rejectnet3d_forward.1} parent=0 // loop_header_branch
    %19 = sbr.rel (%p17) target = $region8
  $region5: #{rejectnet3d_forward.1} parent=0 // loop_body
    %s21 = ssub.s32 %s16, 1
    %s22 = ssub.s32 %s16, 2
    %s32 = sadd.s32 1, %s25
    %p33 = scmp.ge.s32.totalorder %s32, 1
    %s34 = scalar_select %p33, 0, %s32
    %s35 = sadd.s32 1, %s24
    %s36 = scalar_select %p33, %s35, %s24
    %p37 = scmp.ge.s32.totalorder %s36, 1
    %s38 = scalar_select %p37, 0, %s36
    %s39 = sadd.s32 1, %s23
    %s40 = scalar_select %p37, %s39, %s23
    %p41 = scmp.ge.s32.totalorder %s40, 2
    %s42 = scalar_select %p41, 0, %s40
    %s43 = sadd.s32 %s24, %s25
    %s44 = sadd.s32 %s38, %s34
    %s45 = ssub.s32 %s23, %s42
    %s46 = ssub.s32 %s43, %s44
    %s47 = sor.u32 %s45, %s46
    %p48 = scmp.eq.s32.totalorder %s47, 0
    %s50 = sadd.s32 %s49, 1
    %s51 = scalar_select %p48, %s49, %s50
    %p54 = pneg %p48
    %p55 = scmp.eq.s32.totalorder %s16, 1
    %p56 = por %p54, %p55
    %p57 = scmp.ne.s32.totalorder %s49, %s52
    %p58 = scmp.eq.s32.totalorder %s16, 0
    %p59 = por %p57, %p58
    %p60 = scmp.ne.s32.totalorder %s49, %s52
    %p61 = scmp.eq.s32.totalorder %s21, 1
    %p62 = por %p60, %p61
    %p63 = scmp.ne.s32.totalorder %s52, %s53
    %p64 = scmp.eq.s32.totalorder %s21, 0
    %p65 = por %p63, %p64
    %p66 = scmp.ne.s32.totalorder %s52, %s53
    %p67 = scmp.eq.s32.totalorder %s22, 1
    %p68 = por %p66, %p67
    %p70 = scmp.ne.s32.totalorder %s53, %s69
    %p71 = scmp.eq.s32.totalorder %s22, 0
    %p72 = por %p70, %p71
    %s73 = sadd.s32 %s24, %s25
    %s74 = sadd.s32 %s38, %s34
    %s75 = ssub.s32 %s23, %s42
    %s76 = ssub.s32 %s73, %s74
    %s77 = sor.u32 %s75, %s76
    %p78 = scmp.eq.s32.totalorder %s77, 0
    %s80 = sadd.s32 %s79, 1
    %s81 = scalar_select %p78, %s79, %s80
    %p84 = pneg %p78
    %p85 = scmp.eq.s32.totalorder %s16, 1
    %p86 = por %p84, %p85
    %p87 = scmp.ne.s32.totalorder %s79, %s82
    %p88 = scmp.eq.s32.totalorder %s16, 0
    %p89 = por %p87, %p88
    %p90 = scmp.ne.s32.totalorder %s79, %s82
    %p91 = scmp.eq.s32.totalorder %s21, 1
    %p92 = por %p90, %p91
    %p93 = scmp.ne.s32.totalorder %s82, %s83
    %p94 = scmp.eq.s32.totalorder %s21, 0
    %p95 = por %p93, %p94
    %p96 = scmp.ne.s32.totalorder %s82, %s83
    %p97 = scmp.eq.s32.totalorder %s22, 1
    %p98 = por %p96, %p97
    %p100 = scmp.ne.s32.totalorder %s83, %s99
    %p101 = scmp.eq.s32.totalorder %s22, 0
    %p102 = por %p100, %p101
    %s103 = sadd.s32 %s24, %s25
    %s104 = sadd.s32 %s38, %s34
    %s105 = ssub.s32 %s23, %s42
    %s106 = ssub.s32 %s103, %s104
    %s107 = sor.u32 %s105, %s106
    %p108 = scmp.eq.s32.totalorder %s107, 0
    %s110 = sadd.s32 %s109, 1
    %s111 = scalar_select %p108, %s109, %s110
    %p114 = pneg %p108
    %p115 = scmp.eq.s32.totalorder %s16, 1
    %p116 = por %p114, %p115
    %p117 = scmp.ne.s32.totalorder %s109, %s112
    %p118 = scmp.eq.s32.totalorder %s16, 0
    %p119 = por %p117, %p118
    %p120 = scmp.ne.s32.totalorder %s109, %s112
    %p121 = scmp.eq.s32.totalorder %s21, 1
    %p122 = por %p120, %p121
    %p123 = scmp.ne.s32.totalorder %s112, %s113
    %p124 = scmp.eq.s32.totalorder %s21, 0
    %p125 = por %p123, %p124
    %p126 = scmp.ne.s32.totalorder %s112, %s113
    %p127 = scmp.eq.s32.totalorder %s22, 1
    %p128 = por %p126, %p127
    %p130 = scmp.ne.s32.totalorder %s113, %s129
    %p131 = scmp.eq.s32.totalorder %s22, 0
    %p132 = por %p130, %p131
    %s133 = sadd.s32 %s24, %s25
    %s134 = sadd.s32 %s38, %s34
    %s135 = ssub.s32 %s23, %s42
    %s136 = ssub.s32 %s133, %s134
    %s137 = sor.u32 %s135, %s136
    %p138 = scmp.eq.s32.totalorder %s137, 0
    %s140 = sadd.s32 %s139, 1
    %s141 = scalar_select %p138, %s139, %s140
    %p144 = pneg %p138
    %p145 = scmp.eq.s32.totalorder %s16, 1
    %p146 = por %p144, %p145
    %p147 = scmp.ne.s32.totalorder %s139, %s142
    %p148 = scmp.eq.s32.totalorder %s16, 0
    %p149 = por %p147, %p148
    %p150 = scmp.ne.s32.totalorder %s139, %s142
    %p151 = scmp.eq.s32.totalorder %s21, 1
    %p152 = por %p150, %p151
    %p153 = scmp.ne.s32.totalorder %s142, %s143
    %p154 = scmp.eq.s32.totalorder %s21, 0
    %p155 = por %p153, %p154
    %p156 = scmp.ne.s32.totalorder %s142, %s143
    %p157 = scmp.eq.s32.totalorder %s22, 1
    %p158 = por %p156, %p157
    %p160 = scmp.ne.s32.totalorder %s143, %s159
    %p161 = scmp.eq.s32.totalorder %s22, 0
    %p162 = por %p160, %p161
    %s164 = sadd.s32 %s163, 1
    %p167 = scmp.eq.s32.totalorder %s16, 1
    %p168 = scmp.ne.s32.totalorder %s163, %s165
    %p169 = scmp.eq.s32.totalorder %s16, 0
    %p170 = por %p168, %p169
    %p171 = scmp.ne.s32.totalorder %s163, %s165
    %p172 = scmp.eq.s32.totalorder %s21, 1
    %p173 = por %p171, %p172
    %p174 = scmp.ne.s32.totalorder %s165, %s166
    %p175 = scmp.eq.s32.totalorder %s21, 0
    %p176 = por %p174, %p175
    %p177 = scmp.ne.s32.totalorder %s165, %s166
    %p178 = scmp.eq.s32.totalorder %s22, 1
    %p179 = por %p177, %p178
    %p181 = scmp.ne.s32.totalorder %s166, %s180
    %p182 = scmp.eq.s32.totalorder %s22, 0
    %p183 = por %p181, %p182
    %s185 = sadd.s32 %s184, 1
    %p188 = scmp.eq.s32.totalorder %s16, 1
    %p189 = scmp.ne.s32.totalorder %s184, %s186
    %p190 = scmp.eq.s32.totalorder %s16, 0
    %p191 = por %p189, %p190
    %p192 = scmp.ne.s32.totalorder %s184, %s186
    %p193 = scmp.eq.s32.totalorder %s21, 1
    %p194 = por %p192, %p193
    %p195 = scmp.ne.s32.totalorder %s186, %s187
    %p196 = scmp.eq.s32.totalorder %s21, 0
    %p197 = por %p195, %p196
    %p198 = scmp.ne.s32.totalorder %s186, %s187
    %p199 = scmp.eq.s32.totalorder %s22, 1
    %p200 = por %p198, %p199
    %p202 = scmp.ne.s32.totalorder %s187, %s201
    %p203 = scmp.eq.s32.totalorder %s22, 0
    %p204 = por %p202, %p203
    %s206 = sadd.s32 %s205, 1
    %p209 = scmp.eq.s32.totalorder %s16, 1
    %p210 = scmp.ne.s32.totalorder %s205, %s207
    %p211 = scmp.eq.s32.totalorder %s16, 0
    %p212 = por %p210, %p211
    %p213 = scmp.ne.s32.totalorder %s205, %s207
    %p214 = scmp.eq.s32.totalorder %s21, 1
    %p215 = por %p213, %p214
    %p216 = scmp.ne.s32.totalorder %s207, %s208
    %p217 = scmp.eq.s32.totalorder %s21, 0
    %p218 = por %p216, %p217
    %p219 = scmp.ne.s32.totalorder %s207, %s208
    %p220 = scmp.eq.s32.totalorder %s22, 1
    %p221 = por %p219, %p220
    %p223 = scmp.ne.s32.totalorder %s208, %s222
    %p224 = scmp.eq.s32.totalorder %s22, 0
    %p225 = por %p223, %p224
    %s226 = sadd.s32 %s24, %s25
    %s227 = sadd.s32 %s38, %s34
    %s228 = ssub.s32 %s23, %s42
    %s229 = ssub.s32 %s226, %s227
    %s230 = sor.u32 %s228, %s229
    %p231 = scmp.eq.s32.totalorder %s230, 0
    %s233 = sadd.s32 %s232, 1
    %s234 = scalar_select %p231, %s232, %s233
    %p237 = pneg %p231
    %p238 = scmp.eq.s32.totalorder %s16, 1
    %p239 = por %p237, %p238
    %p240 = scmp.ne.s32.totalorder %s232, %s235
    %p241 = scmp.eq.s32.totalorder %s16, 0
    %p242 = por %p240, %p241
    %p243 = scmp.ne.s32.totalorder %s232, %s235
    %p244 = scmp.eq.s32.totalorder %s21, 1
    %p245 = por %p243, %p244
    %p246 = scmp.ne.s32.totalorder %s235, %s236
    %p247 = scmp.eq.s32.totalorder %s21, 0
    %p248 = por %p246, %p247
    %p249 = scmp.ne.s32.totalorder %s235, %s236
    %p250 = scmp.eq.s32.totalorder %s22, 1
    %p251 = por %p249, %p250
    %p253 = scmp.ne.s32.totalorder %s236, %s252
    %p254 = scmp.eq.s32.totalorder %s22, 0
    %p255 = por %p253, %p254
    %s256 = ssub.s32 %s23, %s42
    %s257 = ssub.s32 %s24, %s38
    %s258 = sor.u32 %s256, %s257
    %p259 = scmp.eq.s32.totalorder %s258, 0
    %s261 = sadd.s32 %s260, 1
    %s262 = scalar_select %p259, %s260, %s261
    %p265 = pneg %p259
    %p266 = scmp.eq.s32.totalorder %s16, 1
    %p267 = por %p265, %p266
    %p268 = scmp.ne.s32.totalorder %s260, %s263
    %p269 = scmp.eq.s32.totalorder %s16, 0
    %p270 = por %p268, %p269
    %p271 = scmp.ne.s32.totalorder %s260, %s263
    %p272 = scmp.eq.s32.totalorder %s21, 1
    %p273 = por %p271, %p272
    %p274 = scmp.ne.s32.totalorder %s263, %s264
    %p275 = scmp.eq.s32.totalorder %s21, 0
    %p276 = por %p274, %p275
    %p277 = scmp.ne.s32.totalorder %s263, %s264
    %p278 = scmp.eq.s32.totalorder %s22, 1
    %p279 = por %p277, %p278
    %p281 = scmp.ne.s32.totalorder %s264, %s280
    %p282 = scmp.eq.s32.totalorder %s22, 0
    %p283 = por %p281, %p282
    %p284 = scmp.le.s32.totalorder 1, %s16
    %p285 = scmp.lt.s32.totalorder %s16, 3
    %p286 = pnand %p284, %p285
    %p287 = pneg %p286
    // Predicated region
    $region9: #{rejectnet3d_forward.1} parent=5 // pred_check
      _
    $region10: #{rejectnet3d_forward.1} parent=5 // pred_check_branch
      %289 = sbr.rel (%p286) target = $region12
    $region11: #{rejectnet3d_forward.1} parent=5 // pred_region
      %s290 = ssub.s32 %s16, 1
      // Predicated region
      $region13: #{rejectnet3d_forward.1} parent=11 // pred_check
        %p291 = pneg %p176
      $region14: #{rejectnet3d_forward.1} parent=11 // pred_check_branch
        %293 = sbr.rel (%p291) target = $region16
      $region15: #{rejectnet3d_forward.1} parent=11 // pred_region
        _
      $region16: #{rejectnet3d_forward.1} parent=11 // pred_fallthru
        _
      // Predicated region
      $region17: #{rejectnet3d_forward.1} parent=11 // pred_check
        %p294 = pneg %p197
      $region18: #{rejectnet3d_forward.1} parent=11 // pred_check_branch
        %296 = sbr.rel (%p294) target = $region20
      $region19: #{rejectnet3d_forward.1} parent=11 // pred_region
        _
      $region20: #{rejectnet3d_forward.1} parent=11 // pred_fallthru
        _
      // Predicated region
      $region21: #{rejectnet3d_forward.1} parent=11 // pred_check
        %p297 = pneg %p218
      $region22: #{rejectnet3d_forward.1} parent=11 // pred_check_branch
        %299 = sbr.rel (%p297) target = $region24
      $region23: #{rejectnet3d_forward.1} parent=11 // pred_region
        _
      $region24: #{rejectnet3d_forward.1} parent=11 // pred_fallthru
        _
    $region12: #{rejectnet3d_forward.1} parent=5 // pred_fallthru
      _
    %p300 = scmp.lt.s32.totalorder %s16, 2
    // Predicated region
    $region25: #{rejectnet3d_forward.1} parent=5 // pred_check
      %p301 = pneg %p300
    $region26: #{rejectnet3d_forward.1} parent=5 // pred_check_branch
      %303 = sbr.rel (%p301) target = $region28
    $region27: #{rejectnet3d_forward.1} parent=5 // pred_region
      // Predicated region
      $region29: #{rejectnet3d_forward.1} parent=27 // pred_check
        %p304 = pneg %p59
      $region30: #{rejectnet3d_forward.1} parent=27 // pred_check_branch
        %306 = sbr.rel (%p304) target = $region32
      $region31: #{rejectnet3d_forward.1} parent=27 // pred_region
        %s307 = sadd.s32 %s24, %s25
        %s308 = smul.u32 4, %s307
        %p309 = scmp.lt.s32.totalorder %s23, 1
        %s310 = scalar_select %p309, %s23, 1
        %p311 = scmp.lt.s32.totalorder %s308, 3
        %s312 = scalar_select %p311, %s308, 3
        %s313 = smul.addr %s310, 4
        %s314 = sadd.s32 %s312, %s313
        %s315 = smul.addr %s314, 8
        %s316 = scalar_lea.vmem %s0, %s315
        %s317 = sadd.s32 %s24, %s25
        %s318 = smul.u32 4, %s317
      $region32: #{rejectnet3d_forward.1} parent=27 // pred_fallthru
        _
      // Predicated region
      $region33: #{rejectnet3d_forward.1} parent=27 // pred_check
        %p319 = pneg %p89
      $region34: #{rejectnet3d_forward.1} parent=27 // pred_check_branch
        %321 = sbr.rel (%p319) target = $region36
      $region35: #{rejectnet3d_forward.1} parent=27 // pred_region
        %s322 = sadd.s32 %s24, %s25
        %s323 = smul.u32 4, %s322
        %p324 = scmp.lt.s32.totalorder %s23, 1
        %s325 = scalar_select %p324, %s23, 1
        %p326 = scmp.lt.s32.totalorder %s323, 3
        %s327 = scalar_select %p326, %s323, 3
        %s328 = smul.addr %s325, 4
        %s329 = sadd.s32 %s327, %s328
        %s330 = smul.addr %s329, 8
        %s331 = scalar_lea.vmem %s1, %s330
        %s332 = sadd.s32 %s24, %s25
        %s333 = smul.u32 4, %s332
      $region36: #{rejectnet3d_forward.1} parent=27 // pred_fallthru
        _
      // Predicated region
      $region37: #{rejectnet3d_forward.1} parent=27 // pred_check
        %p334 = pneg %p119
      $region38: #{rejectnet3d_forward.1} parent=27 // pred_check_branch
        %336 = sbr.rel (%p334) target = $region40
      $region39: #{rejectnet3d_forward.1} parent=27 // pred_region
        %s337 = sadd.s32 %s24, %s25
        %s338 = smul.u32 4, %s337
        %p339 = scmp.lt.s32.totalorder %s23, 1
        %s340 = scalar_select %p339, %s23, 1
        %p341 = scmp.lt.s32.totalorder %s338, 3
        %s342 = scalar_select %p341, %s338, 3
        %s343 = smul.addr %s340, 4
        %s344 = sadd.s32 %s342, %s343
        %s345 = smul.addr %s344, 8
        %s346 = scalar_lea.vmem %s2, %s345
        %s347 = sadd.s32 %s24, %s25
        %s348 = smul.u32 4, %s347
      $region40: #{rejectnet3d_forward.1} parent=27 // pred_fallthru
        _
      // Predicated region
      $region41: #{rejectnet3d_forward.1} parent=27 // pred_check
        %p349 = pneg %p149
      $region42: #{rejectnet3d_forward.1} parent=27 // pred_check_branch
        %351 = sbr.rel (%p349) target = $region44
      $region43: #{rejectnet3d_forward.1} parent=27 // pred_region
        %s352 = sadd.s32 %s24, %s25
        %s353 = smul.u32 4, %s352
        %p354 = scmp.lt.s32.totalorder %s23, 1
        %s355 = scalar_select %p354, %s23, 1
        %p356 = scmp.lt.s32.totalorder %s353, 3
        %s357 = scalar_select %p356, %s353, 3
        %s358 = smul.addr %s355, 4
        %s359 = sadd.s32 %s357, %s358
        %s360 = scalar_lea.vmem %s3, %s359
        %s361 = sadd.s32 %s24, %s25
        %s362 = smul.u32 4, %s361
      $region44: #{rejectnet3d_forward.1} parent=27 // pred_fallthru
        _
    $region28: #{rejectnet3d_forward.1} parent=5 // pred_fallthru
      _
    %p363 = scmp.le.s32.totalorder 1, %s16
    %p364 = scmp.lt.s32.totalorder %s16, 3
    %p365 = pnand %p363, %p364
    %p366 = pneg %p365
    // Predicated region
    $region45: #{rejectnet3d_forward.1} parent=5 // pred_check
      _
    $region46: #{rejectnet3d_forward.1} parent=5 // pred_check_branch
      %368 = sbr.rel (%p365) target = $region48
    $region47: #{rejectnet3d_forward.1} parent=5 // pred_region
      %s369 = ssub.s32 %s16, 1
      %s370 = sadd.s32 %s27, %s28
      %s371 = smul.u32 4, %s370
      %p372 = scmp.lt.s32.totalorder %s26, 1
      %s373 = scalar_select %p372, %s26, 1
      %p374 = scmp.lt.s32.totalorder %s371, 3
      %s375 = scalar_select %p374, %s371, 3
      %s376 = smul.addr %s373, 4
      %s377 = sadd.s32 %s375, %s376
      %s378 = smul.addr %s377, 8
      %s379 = scalar_lea.vmem %s0, %s378
      %p380 = pneg %p65
      %p381 = pneg %p62
      %s382 = sadd.s32 %s27, %s28
      %s383 = smul.u32 4, %s382
      %p384 = scmp.lt.s32.totalorder %s26, 1
      %s385 = scalar_select %p384, %s26, 1
      %p386 = scmp.lt.s32.totalorder %s383, 3
      %s387 = scalar_select %p386, %s383, 3
      %s388 = smul.addr %s385, 4
      %s389 = sadd.s32 %s387, %s388
      %s390 = smul.addr %s389, 8
      %s391 = scalar_lea.vmem %s1, %s390
      %p392 = pneg %p95
      %p393 = pneg %p92
      %s394 = sadd.s32 %s27, %s28
      %s395 = smul.u32 4, %s394
      %p396 = scmp.lt.s32.totalorder %s26, 1
      %s397 = scalar_select %p396, %s26, 1
      %p398 = scmp.lt.s32.totalorder %s395, 3
      %s399 = scalar_select %p398, %s395, 3
      %s400 = smul.addr %s397, 4
      %s401 = sadd.s32 %s399, %s400
      %s402 = smul.addr %s401, 8
      %s403 = scalar_lea.vmem %s2, %s402
      %p404 = pneg %p125
      %p405 = pneg %p122
      %s406 = sadd.s32 %s27, %s28
      %s407 = smul.u32 4, %s406
      %p408 = scmp.lt.s32.totalorder %s26, 1
      %s409 = scalar_select %p408, %s26, 1
      %p410 = scmp.lt.s32.totalorder %s407, 3
      %s411 = scalar_select %p410, %s407, 3
      %s412 = smul.addr %s409, 4
      %s413 = sadd.s32 %s411, %s412
      %s414 = scalar_lea.vmem %s3, %s413
      %p415 = pneg %p155
      %p416 = pneg %p152
      %p417 = pneg %p176
      %p418 = pneg %p173
      %p419 = pneg %p197
      %p420 = pneg %p194
      %p421 = pneg %p218
      %p422 = pneg %p215
      %p423 = pneg %p248
      %p424 = pneg %p245
      %s425 = sadd.s32 %s27, %s28
      %s426 = smul.u32 4, %s425
      %p427 = scmp.lt.s32.totalorder %s26, 1
      %s428 = scalar_select %p427, %s26, 1
      %p429 = scmp.lt.s32.totalorder %s426, 3
      %s430 = scalar_select %p429, %s426, 3
      %s431 = smul.addr %s428, 4
      %s432 = sadd.s32 %s430, %s431
      %s433 = scalar_lea.vmem %s7, %s432
      %p434 = pneg %p276
      %p435 = pneg %p273
      %p436 = scmp.lt.s32.totalorder %s26, 1
      %s437 = scalar_select %p436, %s26, 1
      %p438 = scmp.lt.s32.totalorder %s27, 0
      %s439 = scalar_select %p438, %s27, 0
      %s440 = smul.addr %s439, 4
      %s441 = smul.addr %s437, 4
      %s442 = sadd.s32 %s440, %s441
      %s443 = smul.addr %s442, 2
      %s444 = scalar_lea.vmem %s8, %s443
      %s445 = sadd.s32 %s27, %s28
      %s446 = smul.u32 4, %s445
      %p447 = scmp.lt.s32.totalorder %s26, 1
      %s448 = scalar_select %p447, %s26, 1
      %p449 = scmp.lt.s32.totalorder %s446, 3
      %s450 = scalar_select %p449, %s446, 3
      %s451 = smul.addr %s448, 4
      %s452 = sadd.s32 %s450, %s451
      %s453 = smul.addr %s452, 8
      %s454 = scalar_lea.vmem %s0, %s453
      %s455 = sadd.s32 %s27, %s28
      %s456 = smul.u32 4, %s455
      %s457 = sadd.s32 %s27, %s28
      %s458 = smul.u32 4, %s457
      %p459 = scmp.lt.s32.totalorder %s26, 1
      %s460 = scalar_select %p459, %s26, 1
      %p461 = scmp.lt.s32.totalorder %s458, 3
      %s462 = scalar_select %p461, %s458, 3
      %s463 = smul.addr %s460, 4
      %s464 = sadd.s32 %s462, %s463
      %s465 = smul.addr %s464, 8
      %s466 = scalar_lea.vmem %s1, %s465
      %s467 = sadd.s32 %s27, %s28
      %s468 = smul.u32 4, %s467
      %s469 = sadd.s32 %s27, %s28
      %s470 = smul.u32 4, %s469
      %p471 = scmp.lt.s32.totalorder %s26, 1
      %s472 = scalar_select %p471, %s26, 1
      %p473 = scmp.lt.s32.totalorder %s470, 3
      %s474 = scalar_select %p473, %s470, 3
      %s475 = smul.addr %s472, 4
      %s476 = sadd.s32 %s474, %s475
      %s477 = smul.addr %s476, 8
      %s478 = scalar_lea.vmem %s2, %s477
      %s479 = sadd.s32 %s27, %s28
      %s480 = smul.u32 4, %s479
      %s481 = sadd.s32 %s27, %s28
      %s482 = smul.u32 4, %s481
      %p483 = scmp.lt.s32.totalorder %s26, 1
      %s484 = scalar_select %p483, %s26, 1
      %p485 = scmp.lt.s32.totalorder %s482, 3
      %s486 = scalar_select %p485, %s482, 3
      %s487 = smul.addr %s484, 4
      %s488 = sadd.s32 %s486, %s487
      %s489 = scalar_lea.vmem %s3, %s488
      %s490 = sadd.s32 %s27, %s28
      %s491 = smul.u32 4, %s490
      %s492 = sadd.s32 %s27, %s28
      %s493 = smul.u32 4, %s492
      %p494 = scmp.lt.s32.totalorder %s26, 1
      %s495 = scalar_select %p494, %s26, 1
      %p496 = scmp.lt.s32.totalorder %s493, 3
      %s497 = scalar_select %p496, %s493, 3
      %s498 = smul.addr %s495, 4
      %s499 = sadd.s32 %s497, %s498
      %s500 = scalar_lea.vmem %s7, %s499
      %s501 = sadd.s32 %s27, %s28
      %s502 = smul.u32 4, %s501
      %p503 = scmp.lt.s32.totalorder %s26, 1
      %s504 = scalar_select %p503, %s26, 1
      %p505 = scmp.lt.s32.totalorder %s27, 0
      %s506 = scalar_select %p505, %s27, 0
      %s507 = smul.addr %s506, 4
      %s508 = smul.addr %s504, 4
      %s509 = sadd.s32 %s507, %s508
      %s510 = smul.addr %s509, 2
      %s511 = scalar_lea.vmem %s8, %s510
      %p513 = scmp.eq.s32.totalorder %s28, 0
      // Predicated region
      $region49: #{rejectnet3d_forward.1} parent=47 // pred_check
        %p514 = pneg %p513
      $region50: #{rejectnet3d_forward.1} parent=47 // pred_check_branch
        %516 = sbr.rel (%p514) target = $region52
      $region51: #{rejectnet3d_forward.1} parent=47 // pred_region
        %517 = vst [vmem:[%s511] sm:$0xff] 0.0
      $region52: #{rejectnet3d_forward.1} parent=47 // pred_fallthru
        _
      %v518 = vld [vmem:[%s4] sm:$0xf]
      %v519 = vld [vmem:[%s4 + $0x4] sm:$0xf]
      %v520 = vld [vmem:[%s4 + $0x8] sm:$0xf]
      %v521 = vld [vmem:[%s4 + $0xc] sm:$0xf]
      %v522 = vld [vmem:[%s4 + $0x10] sm:$0xf]
      %v523 = vld [vmem:[%s4 + $0x14] sm:$0xf]
      %v524 = vld [vmem:[%s4 + $0x18] sm:$0xf]
      %v525 = vld [vmem:[%s4 + $0x1c] sm:$0xf]
      %v526 = vld [vmem:[%s4 + $0x20] sm:$0xf]
      %v527 = vld [vmem:[%s4 + $0x24] sm:$0xf]
      %v528 = vld [vmem:[%s4 + $0x28] sm:$0xf]
      %v529 = vld [vmem:[%s4 + $0x2c] sm:$0xf]
      %v530 = vld [vmem:[%s4 + $0x30] sm:$0xf]
      %v531 = vld [vmem:[%s4 + $0x34] sm:$0xf]
      %v532 = vld [vmem:[%s4 + $0x38] sm:$0xf]
      %v533 = vld [vmem:[%s4 + $0x3c] sm:$0xf]
      %v534 = vld [vmem:[%s4 + $0x40] sm:$0xf]
      %v535 = vld [vmem:[%s5] sm:$0xff]
      %v536 = vld [vmem:[%s5 + $0x8] sm:$0xff]
      %v537 = vld [vmem:[%s5 + $0x10] sm:$0xff]
      %v538 = vld [vmem:[%s5 + $0x18] sm:$0xff]
      %v539 = vld [vmem:[%s5 + $0x20] sm:$0xff]
      %v540 = vld [vmem:[%s5 + $0x28] sm:$0xff]
      %v541 = vld [vmem:[%s5 + $0x30] sm:$0xff]
      %v542 = vld [vmem:[%s5 + $0x38] sm:$0xff]
      %v543 = vld [vmem:[%s5 + $0x40] sm:$0xff]
      %v544 = vld [vmem:[%s5 + $0x48] sm:$0xff]
      %v545 = vld [vmem:[%s5 + $0x50] sm:$0xff]
      %v546 = vld [vmem:[%s5 + $0x58] sm:$0xff]
      %v547 = vld [vmem:[%s5 + $0x60] sm:$0xff]
      %v548 = vld [vmem:[%s5 + $0x68] sm:$0xff]
      %v549 = vld [vmem:[%s5 + $0x70] sm:$0xff]
      %v550 = vld [vmem:[%s5 + $0x78] sm:$0xff]
      %v551 = vld [vmem:[%s5 + $0x80] sm:$0xff]
      %s552 = sld [smem:[#allocation2]]
      %v553 = vld [vmem:[%s478] sm:$0xff]
      %v554 = vld [vmem:[%s478 + $0x8] sm:$0xff]
      %v555 = vld [vmem:[%s478 + $0x10] sm:$0xff]
      %v556 = vld [vmem:[%s478 + $0x18] sm:$0xff]
      %v557 = vld [vmem:[%s454] sm:$0xff]
      %v558 = vld [vmem:[%s454 + $0x8] sm:$0xff]
      %v559 = vld [vmem:[%s454 + $0x10] sm:$0xff]
      %v560 = vld [vmem:[%s454 + $0x18] sm:$0xff]
      %v561 = vsub.f32 %v557, %v553
      %v562 = vsub.f32 %v558, %v554
      %v563 = vsub.f32 %v559, %v555
      %v564 = vsub.f32 %v560, %v556
      %v565 = vpack.c.bf16 %v562, %v561
      %v566 = vpack.c.bf16 %v564, %v563
      %v567 = vld [vmem:[%s466] sm:$0xff]
      %v568 = vld [vmem:[%s466 + $0x8] sm:$0xff]
      %v569 = vld [vmem:[%s466 + $0x10] sm:$0xff]
      %v570 = vld [vmem:[%s466 + $0x18] sm:$0xff]
      %v571 = vsub.f32 %v567, %v553
      %v572 = vsub.f32 %v568, %v554
      %v573 = vsub.f32 %v569, %v555
      %v574 = vsub.f32 %v570, %v556
      %v575 = vpack.c.bf16 %v572, %v571
      %v576 = vpack.c.bf16 %v574, %v573
      %v579 = vunpack.c.l.b16 %v565
      %v580 = vunpack.c.h.b16 %v565
      %v581 = vunpack.c.l.b16 %v566
      %v582 = vunpack.c.h.b16 %v566
      %v583 = vpack.c.b16 %v579, %v579
      %v584 = vpack.c.b16 %v580, %v580
      %v585 = vpack.c.b16 %v581, %v581
      %v586 = vpack.c.b16 %v582, %v582
      %v589 = vunpack.c.l.b16 %v575
      %v590 = vunpack.c.h.b16 %v575
      %v591 = vunpack.c.l.b16 %v576
      %v592 = vunpack.c.h.b16 %v576
      %v593 = vpack.c.b16 %v589, %v589
      %v594 = vpack.c.b16 %v590, %v590
      %v595 = vpack.c.b16 %v591, %v591
      %v596 = vpack.c.b16 %v592, %v592
      %598 = vset.pattern.permute.xlu0 0
      %599 = vperm.xlu0 %598, %v535
      %v600 = vpop.permute.xlu0 %599
      %603 = vset.pattern.permute.xlu0 0
      %604 = vperm.xlu0 %603, %v536
      %v605 = vpop.permute.xlu0 %604
      %608 = vset.pattern.permute.xlu0 0
      %609 = vperm.xlu0 %608, %v537
      %v610 = vpop.permute.xlu0 %609
      %613 = vset.pattern.permute.xlu0 0
      %614 = vperm.xlu0 %613, %v538
      %v615 = vpop.permute.xlu0 %614
      %618 = vset.pattern.permute.xlu0 0
      %619 = vperm.xlu0 %618, %v539
      %v620 = vpop.permute.xlu0 %619
      %623 = vset.pattern.permute.xlu0 0
      %624 = vperm.xlu0 %623, %v540
      %v625 = vpop.permute.xlu0 %624
      %628 = vset.pattern.permute.xlu0 0
      %629 = vperm.xlu0 %628, %v541
      %v630 = vpop.permute.xlu0 %629
      %633 = vset.pattern.permute.xlu0 0
      %634 = vperm.xlu0 %633, %v542
      %v635 = vpop.permute.xlu0 %634
      %638 = vset.pattern.permute.xlu0 0
      %639 = vperm.xlu0 %638, %v543
      %v640 = vpop.permute.xlu0 %639
      %643 = vset.pattern.permute.xlu0 0
      %644 = vperm.xlu0 %643, %v544
      %v645 = vpop.permute.xlu0 %644
      %648 = vset.pattern.permute.xlu0 0
      %649 = vperm.xlu0 %648, %v545
      %v650 = vpop.permute.xlu0 %649
      %653 = vset.pattern.permute.xlu0 0
      %654 = vperm.xlu0 %653, %v546
      %v655 = vpop.permute.xlu0 %654
      %658 = vset.pattern.permute.xlu0 0
      %659 = vperm.xlu0 %658, %v547
      %v660 = vpop.permute.xlu0 %659
      %663 = vset.pattern.permute.xlu0 0
      %664 = vperm.xlu0 %663, %v548
      %v665 = vpop.permute.xlu0 %664
      %668 = vset.pattern.permute.xlu0 0
      %669 = vperm.xlu0 %668, %v549
      %v670 = vpop.permute.xlu0 %669
      %673 = vset.pattern.permute.xlu0 0
      %674 = vperm.xlu0 %673, %v550
      %v675 = vpop.permute.xlu0 %674
      %678 = vset.pattern.permute.xlu0 0
      %679 = vperm.xlu0 %678, %v551
      %v680 = vpop.permute.xlu0 %679
      %v699 = vunpack.c.l.b16 %v518
      %v700 = vunpack.c.l.b16 %v519
      %v701 = vunpack.c.l.b16 %v520
      %v702 = vunpack.c.l.b16 %v521
      %v703 = vunpack.c.l.b16 %v522
      %v704 = vunpack.c.l.b16 %v523
      %v705 = vunpack.c.l.b16 %v524
      %v706 = vunpack.c.l.b16 %v525
      %v707 = vunpack.c.l.b16 %v526
      %v708 = vunpack.c.l.b16 %v527
      %v709 = vunpack.c.l.b16 %v528
      %v710 = vunpack.c.l.b16 %v529
      %v711 = vunpack.c.l.b16 %v530
      %v712 = vunpack.c.l.b16 %v531
      %v713 = vunpack.c.l.b16 %v532
      %v714 = vunpack.c.l.b16 %v533
      %v715 = vunpack.c.l.b16 %v534
      %v716 = vpack.c.b16 %v700, %v699
      %v717 = vpack.c.b16 %v702, %v701
      %v718 = vpack.c.b16 %v704, %v703
      %v719 = vpack.c.b16 %v706, %v705
      %v720 = vpack.c.b16 %v708, %v707
      %v721 = vpack.c.b16 %v710, %v709
      %v722 = vpack.c.b16 %v712, %v711
      %v723 = vpack.c.b16 %v714, %v713
      %v724 = vpack.c.b16 %v715, %v715
      %vm725 = vcmask 64512
      %v727 = vsel %vm725, %v716, 0
      %v730 = vsel %vm725, %v717, 0
      %v733 = vsel %vm725, %v718, 0
      %v736 = vsel %vm725, %v719, 0
      %v739 = vsel %vm725, %v720, 0
      %v742 = vsel %vm725, %v721, 0
      %v745 = vsel %vm725, %v722, 0
      %v748 = vsel %vm725, %v723, 0
      %v751 = vsel %vm725, %v724, 0
      %vm753 = vcmask 1043456
      %v755 = vsel %vm753, %v583, 0
      %v758 = vsel %vm753, %v584, 0
      %v761 = vsel %vm753, %v585, 0
      %v764 = vsel %vm753, %v586, 0
      %v767 = vsel %vm753, %v593, 0
      %v770 = vsel %vm753, %v594, 0
      %v773 = vsel %vm753, %v595, 0
      %v776 = vsel %vm753, %v596, 0
      %778 = vmatpush.bf16.msra.mxu0 0
      %779 = vmatpush.bf16.msra.mxu0 0
      %780 = vmatpush.bf16.msra.mxu0 0
      %781 = vmatpush.bf16.msra.mxu0 0
      %782 = vmatpush.bf16.msra.mxu0 0
      %783 = vmatpush.bf16.msra.mxu0 0
      %784 = vmatpush.bf16.msra.mxu0 0
      %785 = vmatpush.bf16.msra.mxu0 %v755
      %786 = vmatmul.bf16.gmra.mxu0 %v727
      %v787 = vpop.f32.mrf.mxu0
      %v788 = vadd.f32 %v600, %v787
      %v789 = vpop.f32.mrf.mxu0
      %v790 = vadd.f32 %v605, %v789
      %791 = vmatmul.bf16.gmra.mxu0 %v730
      %v792 = vpop.f32.mrf.mxu0
      %v793 = vadd.f32 %v610, %v792
      %v794 = vpop.f32.mrf.mxu0
      %v795 = vadd.f32 %v615, %v794
      %796 = vmatmul.bf16.gmra.mxu0 %v733
      %v797 = vpop.f32.mrf.mxu0
      %v798 = vadd.f32 %v620, %v797
      %v799 = vpop.f32.mrf.mxu0
      %v800 = vadd.f32 %v625, %v799
      %801 = vmatmul.bf16.gmra.mxu0 %v736
      %v802 = vpop.f32.mrf.mxu0
      %v803 = vadd.f32 %v630, %v802
      %v804 = vpop.f32.mrf.mxu0
      %v805 = vadd.f32 %v635, %v804
      %806 = vmatmul.bf16.gmra.mxu0 %v739
      %v807 = vpop.f32.mrf.mxu0
      %v808 = vadd.f32 %v640, %v807
      %v809 = vpop.f32.mrf.mxu0
      %v810 = vadd.f32 %v645, %v809
      %811 = vmatmul.bf16.gmra.mxu0 %v742
      %v812 = vpop.f32.mrf.mxu0
      %v813 = vadd.f32 %v650, %v812
      %v814 = vpop.f32.mrf.mxu0
      %v815 = vadd.f32 %v655, %v814
      %816 = vmatmul.bf16.gmra.mxu0 %v745
      %v817 = vpop.f32.mrf.mxu0
      %v818 = vadd.f32 %v660, %v817
      %v819 = vpop.f32.mrf.mxu0
      %v820 = vadd.f32 %v665, %v819
      %821 = vmatmul.bf16.gmra.mxu0 %v748
      %v822 = vpop.f32.mrf.mxu0
      %v823 = vadd.f32 %v670, %v822
      %v824 = vpop.f32.mrf.mxu0
      %v825 = vadd.f32 %v675, %v824
      %826 = vmatmul.bf16.gmra.mxu0 %v751
      %v827 = vpop.f32.mrf.mxu0
      %v828 = vadd.f32 %v680, %v827
      %v829 = vpop.f32.mrf.mxu0
      %830 = vdwg.mxu0
      %831 = vmatpush.bf16.msra.mxu0 0
      %832 = vmatpush.bf16.msra.mxu0 0
      %833 = vmatpush.bf16.msra.mxu0 0
      %834 = vmatpush.bf16.msra.mxu0 0
      %835 = vmatpush.bf16.msra.mxu0 0
      %836 = vmatpush.bf16.msra.mxu0 0
      %837 = vmatpush.bf16.msra.mxu0 0
      %838 = vmatpush.bf16.msra.mxu0 %v758
      %839 = vmatmul.bf16.gmra.mxu0 %v727
      %v840 = vpop.f32.mrf.mxu0
      %v841 = vadd.f32 %v600, %v840
      %v842 = vpop.f32.mrf.mxu0
      %v843 = vadd.f32 %v605, %v842
      %844 = vmatmul.bf16.gmra.mxu0 %v730
      %v845 = vpop.f32.mrf.mxu0
      %v846 = vadd.f32 %v610, %v845
      %v847 = vpop.f32.mrf.mxu0
      %v848 = vadd.f32 %v615, %v847
      %849 = vmatmul.bf16.gmra.mxu0 %v733
      %v850 = vpop.f32.mrf.mxu0
      %v851 = vadd.f32 %v620, %v850
      %v852 = vpop.f32.mrf.mxu0
      %v853 = vadd.f32 %v625, %v852
      %854 = vmatmul.bf16.gmra.mxu0 %v736
      %v855 = vpop.f32.mrf.mxu0
      %v856 = vadd.f32 %v630, %v855
      %v857 = vpop.f32.mrf.mxu0
      %v858 = vadd.f32 %v635, %v857
      %859 = vmatmul.bf16.gmra.mxu0 %v739
      %v860 = vpop.f32.mrf.mxu0
      %v861 = vadd.f32 %v640, %v860
      %v862 = vpop.f32.mrf.mxu0
      %v863 = vadd.f32 %v645, %v862
      %864 = vmatmul.bf16.gmra.mxu0 %v742
      %v865 = vpop.f32.mrf.mxu0
      %v866 = vadd.f32 %v650, %v865
      %v867 = vpop.f32.mrf.mxu0
      %v868 = vadd.f32 %v655, %v867
      %869 = vmatmul.bf16.gmra.mxu0 %v745
      %v870 = vpop.f32.mrf.mxu0
      %v871 = vadd.f32 %v660, %v870
      %v872 = vpop.f32.mrf.mxu0
      %v873 = vadd.f32 %v665, %v872
      %874 = vmatmul.bf16.gmra.mxu0 %v748
      %v875 = vpop.f32.mrf.mxu0
      %v876 = vadd.f32 %v670, %v875
      %v877 = vpop.f32.mrf.mxu0
      %v878 = vadd.f32 %v675, %v877
      %879 = vmatmul.bf16.gmra.mxu0 %v751
      %v880 = vpop.f32.mrf.mxu0
      %v881 = vadd.f32 %v680, %v880
      %v882 = vpop.f32.mrf.mxu0
      %883 = vdwg.mxu0
      %884 = vmatpush.bf16.msra.mxu0 0
      %885 = vmatpush.bf16.msra.mxu0 0
      %886 = vmatpush.bf16.msra.mxu0 0
      %887 = vmatpush.bf16.msra.mxu0 0
      %888 = vmatpush.bf16.msra.mxu0 0
      %889 = vmatpush.bf16.msra.mxu0 0
      %890 = vmatpush.bf16.msra.mxu0 0
      %891 = vmatpush.bf16.msra.mxu0 %v761
      %892 = vmatmul.bf16.gmra.mxu0 %v727
      %v893 = vpop.f32.mrf.mxu0
      %v894 = vadd.f32 %v600, %v893
      %v895 = vpop.f32.mrf.mxu0
      %v896 = vadd.f32 %v605, %v895
      %897 = vmatmul.bf16.gmra.mxu0 %v730
      %v898 = vpop.f32.mrf.mxu0
      %v899 = vadd.f32 %v610, %v898
      %v900 = vpop.f32.mrf.mxu0
      %v901 = vadd.f32 %v615, %v900
      %902 = vmatmul.bf16.gmra.mxu0 %v733
      %v903 = vpop.f32.mrf.mxu0
      %v904 = vadd.f32 %v620, %v903
      %v905 = vpop.f32.mrf.mxu0
      %v906 = vadd.f32 %v625, %v905
      %907 = vmatmul.bf16.gmra.mxu0 %v736
      %v908 = vpop.f32.mrf.mxu0
      %v909 = vadd.f32 %v630, %v908
      %v910 = vpop.f32.mrf.mxu0
      %v911 = vadd.f32 %v635, %v910
      %912 = vmatmul.bf16.gmra.mxu0 %v739
      %v913 = vpop.f32.mrf.mxu0
      %v914 = vadd.f32 %v640, %v913
      %v915 = vpop.f32.mrf.mxu0
      %v916 = vadd.f32 %v645, %v915
      %917 = vmatmul.bf16.gmra.mxu0 %v742
      %v918 = vpop.f32.mrf.mxu0
      %v919 = vadd.f32 %v650, %v918
      %v920 = vpop.f32.mrf.mxu0
      %v921 = vadd.f32 %v655, %v920
      %922 = vmatmul.bf16.gmra.mxu0 %v745
      %v923 = vpop.f32.mrf.mxu0
      %v924 = vadd.f32 %v660, %v923
      %v925 = vpop.f32.mrf.mxu0
      %v926 = vadd.f32 %v665, %v925
      %927 = vmatmul.bf16.gmra.mxu0 %v748
      %v928 = vpop.f32.mrf.mxu0
      %v929 = vadd.f32 %v670, %v928
      %v930 = vpop.f32.mrf.mxu0
      %v931 = vadd.f32 %v675, %v930
      %932 = vmatmul.bf16.gmra.mxu0 %v751
      %v933 = vpop.f32.mrf.mxu0
      %v934 = vadd.f32 %v680, %v933
      %v935 = vpop.f32.mrf.mxu0
      %936 = vdwg.mxu0
      %937 = vmatpush.bf16.msra.mxu0 0
      %938 = vmatpush.bf16.msra.mxu0 0
      %939 = vmatpush.bf16.msra.mxu0 0
      %940 = vmatpush.bf16.msra.mxu0 0
      %941 = vmatpush.bf16.msra.mxu0 0
      %942 = vmatpush.bf16.msra.mxu0 0
      %943 = vmatpush.bf16.msra.mxu0 0
      %944 = vmatpush.bf16.msra.mxu0 %v764
      %945 = vmatmul.bf16.gmra.mxu0 %v727
      %v946 = vpop.f32.mrf.mxu0
      %v947 = vadd.f32 %v600, %v946
      %v948 = vpop.f32.mrf.mxu0
      %v949 = vadd.f32 %v605, %v948
      %950 = vmatmul.bf16.gmra.mxu0 %v730
      %v951 = vpop.f32.mrf.mxu0
      %v952 = vadd.f32 %v610, %v951
      %v953 = vpop.f32.mrf.mxu0
      %v954 = vadd.f32 %v615, %v953
      %955 = vmatmul.bf16.gmra.mxu0 %v733
      %v956 = vpop.f32.mrf.mxu0
      %v957 = vadd.f32 %v620, %v956
      %v958 = vpop.f32.mrf.mxu0
      %v959 = vadd.f32 %v625, %v958
      %960 = vmatmul.bf16.gmra.mxu0 %v736
      %v961 = vpop.f32.mrf.mxu0
      %v962 = vadd.f32 %v630, %v961
      %v963 = vpop.f32.mrf.mxu0
      %v964 = vadd.f32 %v635, %v963
      %965 = vmatmul.bf16.gmra.mxu0 %v739
      %v966 = vpop.f32.mrf.mxu0
      %v967 = vadd.f32 %v640, %v966
      %v968 = vpop.f32.mrf.mxu0
      %v969 = vadd.f32 %v645, %v968
      %970 = vmatmul.bf16.gmra.mxu0 %v742
      %v971 = vpop.f32.mrf.mxu0
      %v972 = vadd.f32 %v650, %v971
      %v973 = vpop.f32.mrf.mxu0
      %v974 = vadd.f32 %v655, %v973
      %975 = vmatmul.bf16.gmra.mxu0 %v745
      %v976 = vpop.f32.mrf.mxu0
      %v977 = vadd.f32 %v660, %v976
      %v978 = vpop.f32.mrf.mxu0
      %v979 = vadd.f32 %v665, %v978
      %980 = vmatmul.bf16.gmra.mxu0 %v748
      %v981 = vpop.f32.mrf.mxu0
      %v982 = vadd.f32 %v670, %v981
      %v983 = vpop.f32.mrf.mxu0
      %v984 = vadd.f32 %v675, %v983
      %985 = vmatmul.bf16.gmra.mxu0 %v751
      %v986 = vpop.f32.mrf.mxu0
      %v987 = vadd.f32 %v680, %v986
      %v988 = vpop.f32.mrf.mxu0
      %989 = vdwg.mxu0
      %990 = vmatpush.bf16.msra.mxu0 0
      %991 = vmatpush.bf16.msra.mxu0 0
      %992 = vmatpush.bf16.msra.mxu0 0
      %993 = vmatpush.bf16.msra.mxu0 0
      %994 = vmatpush.bf16.msra.mxu0 0
      %995 = vmatpush.bf16.msra.mxu0 0
      %996 = vmatpush.bf16.msra.mxu0 0
      %997 = vmatpush.bf16.msra.mxu0 %v767
      %998 = vmatmul.bf16.gmra.mxu0 %v727
      %v999 = vpop.f32.mrf.mxu0
      %v1000 = vadd.f32 %v600, %v999
      %v1001 = vpop.f32.mrf.mxu0
      %v1002 = vadd.f32 %v605, %v1001
      %1003 = vmatmul.bf16.gmra.mxu0 %v730
      %v1004 = vpop.f32.mrf.mxu0
      %v1005 = vadd.f32 %v610, %v1004
      %v1006 = vpop.f32.mrf.mxu0
      %v1007 = vadd.f32 %v615, %v1006
      %1008 = vmatmul.bf16.gmra.mxu0 %v733
      %v1009 = vpop.f32.mrf.mxu0
      %v1010 = vadd.f32 %v620, %v1009
      %v1011 = vpop.f32.mrf.mxu0
      %v1012 = vadd.f32 %v625, %v1011
      %1013 = vmatmul.bf16.gmra.mxu0 %v736
      %v1014 = vpop.f32.mrf.mxu0
      %v1015 = vadd.f32 %v630, %v1014
      %v1016 = vpop.f32.mrf.mxu0
      %v1017 = vadd.f32 %v635, %v1016
      %1018 = vmatmul.bf16.gmra.mxu0 %v739
      %v1019 = vpop.f32.mrf.mxu0
      %v1020 = vadd.f32 %v640, %v1019
      %v1021 = vpop.f32.mrf.mxu0
      %v1022 = vadd.f32 %v645, %v1021
      %1023 = vmatmul.bf16.gmra.mxu0 %v742
      %v1024 = vpop.f32.mrf.mxu0
      %v1025 = vadd.f32 %v650, %v1024
      %v1026 = vpop.f32.mrf.mxu0
      %v1027 = vadd.f32 %v655, %v1026
      %1028 = vmatmul.bf16.gmra.mxu0 %v745
      %v1029 = vpop.f32.mrf.mxu0
      %v1030 = vadd.f32 %v660, %v1029
      %v1031 = vpop.f32.mrf.mxu0
      %v1032 = vadd.f32 %v665, %v1031
      %1033 = vmatmul.bf16.gmra.mxu0 %v748
      %v1034 = vpop.f32.mrf.mxu0
      %v1035 = vadd.f32 %v670, %v1034
      %v1036 = vpop.f32.mrf.mxu0
      %v1037 = vadd.f32 %v675, %v1036
      %1038 = vmatmul.bf16.gmra.mxu0 %v751
      %v1039 = vpop.f32.mrf.mxu0
      %v1040 = vadd.f32 %v680, %v1039
      %v1041 = vpop.f32.mrf.mxu0
      %1042 = vdwg.mxu0
      %1043 = vmatpush.bf16.msra.mxu0 0
      %1044 = vmatpush.bf16.msra.mxu0 0
      %1045 = vmatpush.bf16.msra.mxu0 0
      %1046 = vmatpush.bf16.msra.mxu0 0
      %1047 = vmatpush.bf16.msra.mxu0 0
      %1048 = vmatpush.bf16.msra.mxu0 0
      %1049 = vmatpush.bf16.msra.mxu0 0
      %1050 = vmatpush.bf16.msra.mxu0 %v770
      %1051 = vmatmul.bf16.gmra.mxu0 %v727
      %v1052 = vpop.f32.mrf.mxu0
      %v1053 = vadd.f32 %v600, %v1052
      %v1054 = vpop.f32.mrf.mxu0
      %v1055 = vadd.f32 %v605, %v1054
      %1056 = vmatmul.bf16.gmra.mxu0 %v730
      %v1057 = vpop.f32.mrf.mxu0
      %v1058 = vadd.f32 %v610, %v1057
      %v1059 = vpop.f32.mrf.mxu0
      %v1060 = vadd.f32 %v615, %v1059
      %1061 = vmatmul.bf16.gmra.mxu0 %v733
      %v1062 = vpop.f32.mrf.mxu0
      %v1063 = vadd.f32 %v620, %v1062
      %v1064 = vpop.f32.mrf.mxu0
      %v1065 = vadd.f32 %v625, %v1064
      %1066 = vmatmul.bf16.gmra.mxu0 %v736
      %v1067 = vpop.f32.mrf.mxu0
      %v1068 = vadd.f32 %v630, %v1067
      %v1069 = vpop.f32.mrf.mxu0
      %v1070 = vadd.f32 %v635, %v1069
      %1071 = vmatmul.bf16.gmra.mxu0 %v739
      %v1072 = vpop.f32.mrf.mxu0
      %v1073 = vadd.f32 %v640, %v1072
      %v1074 = vpop.f32.mrf.mxu0
      %v1075 = vadd.f32 %v645, %v1074
      %1076 = vmatmul.bf16.gmra.mxu0 %v742
      %v1077 = vpop.f32.mrf.mxu0
      %v1078 = vadd.f32 %v650, %v1077
      %v1079 = vpop.f32.mrf.mxu0
      %v1080 = vadd.f32 %v655, %v1079
      %1081 = vmatmul.bf16.gmra.mxu0 %v745
      %v1082 = vpop.f32.mrf.mxu0
      %v1083 = vadd.f32 %v660, %v1082
      %v1084 = vpop.f32.mrf.mxu0
      %v1085 = vadd.f32 %v665, %v1084
      %1086 = vmatmul.bf16.gmra.mxu0 %v748
      %v1087 = vpop.f32.mrf.mxu0
      %v1088 = vadd.f32 %v670, %v1087
      %v1089 = vpop.f32.mrf.mxu0
      %v1090 = vadd.f32 %v675, %v1089
      %1091 = vmatmul.bf16.gmra.mxu0 %v751
      %v1092 = vpop.f32.mrf.mxu0
      %v1093 = vadd.f32 %v680, %v1092
      %v1094 = vpop.f32.mrf.mxu0
      %1095 = vdwg.mxu0
      %1096 = vmatpush.bf16.msra.mxu0 0
      %1097 = vmatpush.bf16.msra.mxu0 0
      %1098 = vmatpush.bf16.msra.mxu0 0
      %1099 = vmatpush.bf16.msra.mxu0 0
      %1100 = vmatpush.bf16.msra.mxu0 0
      %1101 = vmatpush.bf16.msra.mxu0 0
      %1102 = vmatpush.bf16.msra.mxu0 0
      %1103 = vmatpush.bf16.msra.mxu0 %v773
      %1104 = vmatmul.bf16.gmra.mxu0 %v727
      %v1105 = vpop.f32.mrf.mxu0
      %v1106 = vadd.f32 %v600, %v1105
      %v1107 = vpop.f32.mrf.mxu0
      %v1108 = vadd.f32 %v605, %v1107
      %1109 = vmatmul.bf16.gmra.mxu0 %v730
      %v1110 = vpop.f32.mrf.mxu0
      %v1111 = vadd.f32 %v610, %v1110
      %v1112 = vpop.f32.mrf.mxu0
      %v1113 = vadd.f32 %v615, %v1112
      %1114 = vmatmul.bf16.gmra.mxu0 %v733
      %v1115 = vpop.f32.mrf.mxu0
      %v1116 = vadd.f32 %v620, %v1115
      %v1117 = vpop.f32.mrf.mxu0
      %v1118 = vadd.f32 %v625, %v1117
      %1119 = vmatmul.bf16.gmra.mxu0 %v736
      %v1120 = vpop.f32.mrf.mxu0
      %v1121 = vadd.f32 %v630, %v1120
      %v1122 = vpop.f32.mrf.mxu0
      %v1123 = vadd.f32 %v635, %v1122
      %1124 = vmatmul.bf16.gmra.mxu0 %v739
      %v1125 = vpop.f32.mrf.mxu0
      %v1126 = vadd.f32 %v640, %v1125
      %v1127 = vpop.f32.mrf.mxu0
      %v1128 = vadd.f32 %v645, %v1127
      %1129 = vmatmul.bf16.gmra.mxu0 %v742
      %v1130 = vpop.f32.mrf.mxu0
      %v1131 = vadd.f32 %v650, %v1130
      %v1132 = vpop.f32.mrf.mxu0
      %v1133 = vadd.f32 %v655, %v1132
      %1134 = vmatmul.bf16.gmra.mxu0 %v745
      %v1135 = vpop.f32.mrf.mxu0
      %v1136 = vadd.f32 %v660, %v1135
      %v1137 = vpop.f32.mrf.mxu0
      %v1138 = vadd.f32 %v665, %v1137
      %1139 = vmatmul.bf16.gmra.mxu0 %v748
      %v1140 = vpop.f32.mrf.mxu0
      %v1141 = vadd.f32 %v670, %v1140
      %v1142 = vpop.f32.mrf.mxu0
      %v1143 = vadd.f32 %v675, %v1142
      %1144 = vmatmul.bf16.gmra.mxu0 %v751
      %v1145 = vpop.f32.mrf.mxu0
      %v1146 = vadd.f32 %v680, %v1145
      %v1147 = vpop.f32.mrf.mxu0
      %1148 = vdwg.mxu0
      %1149 = vmatpush.bf16.msra.mxu0 0
      %1150 = vmatpush.bf16.msra.mxu0 0
      %1151 = vmatpush.bf16.msra.mxu0 0
      %1152 = vmatpush.bf16.msra.mxu0 0
      %1153 = vmatpush.bf16.msra.mxu0 0
      %1154 = vmatpush.bf16.msra.mxu0 0
      %1155 = vmatpush.bf16.msra.mxu0 0
      %1156 = vmatpush.bf16.msra.mxu0 %v776
      %1157 = vmatmul.bf16.gmra.mxu0 %v727
      %v1158 = vpop.f32.mrf.mxu0
      %v1159 = vadd.f32 %v600, %v1158
      %v1160 = vpop.f32.mrf.mxu0
      %v1161 = vadd.f32 %v605, %v1160
      %1162 = vmatmul.bf16.gmra.mxu0 %v730
      %v1163 = vpop.f32.mrf.mxu0
      %v1164 = vadd.f32 %v610, %v1163
      %v1165 = vpop.f32.mrf.mxu0
      %v1166 = vadd.f32 %v615, %v1165
      %1167 = vmatmul.bf16.gmra.mxu0 %v733
      %v1168 = vpop.f32.mrf.mxu0
      %v1169 = vadd.f32 %v620, %v1168
      %v1170 = vpop.f32.mrf.mxu0
      %v1171 = vadd.f32 %v625, %v1170
      %1172 = vmatmul.bf16.gmra.mxu0 %v736
      %v1173 = vpop.f32.mrf.mxu0
      %v1174 = vadd.f32 %v630, %v1173
      %v1175 = vpop.f32.mrf.mxu0
      %v1176 = vadd.f32 %v635, %v1175
      %1177 = vmatmul.bf16.gmra.mxu0 %v739
      %v1178 = vpop.f32.mrf.mxu0
      %v1179 = vadd.f32 %v640, %v1178
      %v1180 = vpop.f32.mrf.mxu0
      %v1181 = vadd.f32 %v645, %v1180
      %1182 = vmatmul.bf16.gmra.mxu0 %v742
      %v1183 = vpop.f32.mrf.mxu0
      %v1184 = vadd.f32 %v650, %v1183
      %v1185 = vpop.f32.mrf.mxu0
      %v1186 = vadd.f32 %v655, %v1185
      %1187 = vmatmul.bf16.gmra.mxu0 %v745
      %v1188 = vpop.f32.mrf.mxu0
      %v1189 = vadd.f32 %v660, %v1188
      %v1190 = vpop.f32.mrf.mxu0
      %v1191 = vadd.f32 %v665, %v1190
      %1192 = vmatmul.bf16.gmra.mxu0 %v748
      %v1193 = vpop.f32.mrf.mxu0
      %v1194 = vadd.f32 %v670, %v1193
      %v1195 = vpop.f32.mrf.mxu0
      %v1196 = vadd.f32 %v675, %v1195
      %1197 = vmatmul.bf16.gmra.mxu0 %v751
      %v1198 = vpop.f32.mrf.mxu0
      %v1199 = vadd.f32 %v680, %v1198
      %v1200 = vpop.f32.mrf.mxu0
      %1201 = vdwg.mxu0
      %v1202 = vmax.f32 %v788, 0.0
      %v1203 = vmax.f32 %v841, 0.0
      %v1204 = vmax.f32 %v894, 0.0
      %v1205 = vmax.f32 %v947, 0.0
      %v1206 = vmax.f32 %v1000, 0.0
      %v1207 = vmax.f32 %v1053, 0.0
      %v1208 = vmax.f32 %v1106, 0.0
      %v1209 = vmax.f32 %v1159, 0.0
      %v1210 = vmax.f32 %v790, 0.0
      %v1211 = vmax.f32 %v843, 0.0
      %v1212 = vmax.f32 %v896, 0.0
      %v1213 = vmax.f32 %v949, 0.0
      %v1214 = vmax.f32 %v1002, 0.0
      %v1215 = vmax.f32 %v1055, 0.0
      %v1216 = vmax.f32 %v1108, 0.0
      %v1217 = vmax.f32 %v1161, 0.0
      %v1218 = vmax.f32 %v793, 0.0
      %v1219 = vmax.f32 %v846, 0.0
      %v1220 = vmax.f32 %v899, 0.0
      %v1221 = vmax.f32 %v952, 0.0
      %v1222 = vmax.f32 %v1005, 0.0
      %v1223 = vmax.f32 %v1058, 0.0
      %v1224 = vmax.f32 %v1111, 0.0
      %v1225 = vmax.f32 %v1164, 0.0
      %v1226 = vmax.f32 %v795, 0.0
      %v1227 = vmax.f32 %v848, 0.0
      %v1228 = vmax.f32 %v901, 0.0
      %v1229 = vmax.f32 %v954, 0.0
      %v1230 = vmax.f32 %v1007, 0.0
      %v1231 = vmax.f32 %v1060, 0.0
      %v1232 = vmax.f32 %v1113, 0.0
      %v1233 = vmax.f32 %v1166, 0.0
      %v1234 = vmax.f32 %v798, 0.0
      %v1235 = vmax.f32 %v851, 0.0
      %v1236 = vmax.f32 %v904, 0.0
      %v1237 = vmax.f32 %v957, 0.0
      %v1238 = vmax.f32 %v1010, 0.0
      %v1239 = vmax.f32 %v1063, 0.0
      %v1240 = vmax.f32 %v1116, 0.0
      %v1241 = vmax.f32 %v1169, 0.0
      %v1242 = vmax.f32 %v800, 0.0
      %v1243 = vmax.f32 %v853, 0.0
      %v1244 = vmax.f32 %v906, 0.0
      %v1245 = vmax.f32 %v959, 0.0
      %v1246 = vmax.f32 %v1012, 0.0
      %v1247 = vmax.f32 %v1065, 0.0
      %v1248 = vmax.f32 %v1118, 0.0
      %v1249 = vmax.f32 %v1171, 0.0
      %v1250 = vmax.f32 %v803, 0.0
      %v1251 = vmax.f32 %v856, 0.0
      %v1252 = vmax.f32 %v909, 0.0
      %v1253 = vmax.f32 %v962, 0.0
      %v1254 = vmax.f32 %v1015, 0.0
      %v1255 = vmax.f32 %v1068, 0.0
      %v1256 = vmax.f32 %v1121, 0.0
      %v1257 = vmax.f32 %v1174, 0.0
      %v1258 = vmax.f32 %v805, 0.0
      %v1259 = vmax.f32 %v858, 0.0
      %v1260 = vmax.f32 %v911, 0.0
      %v1261 = vmax.f32 %v964, 0.0
      %v1262 = vmax.f32 %v1017, 0.0
      %v1263 = vmax.f32 %v1070, 0.0
      %v1264 = vmax.f32 %v1123, 0.0
      %v1265 = vmax.f32 %v1176, 0.0
      %v1266 = vmax.f32 %v808, 0.0
      %v1267 = vmax.f32 %v861, 0.0
      %v1268 = vmax.f32 %v914, 0.0
      %v1269 = vmax.f32 %v967, 0.0
      %v1270 = vmax.f32 %v1020, 0.0
      %v1271 = vmax.f32 %v1073, 0.0
      %v1272 = vmax.f32 %v1126, 0.0
      %v1273 = vmax.f32 %v1179, 0.0
      %v1274 = vmax.f32 %v810, 0.0
      %v1275 = vmax.f32 %v863, 0.0
      %v1276 = vmax.f32 %v916, 0.0
      %v1277 = vmax.f32 %v969, 0.0
      %v1278 = vmax.f32 %v1022, 0.0
      %v1279 = vmax.f32 %v1075, 0.0
      %v1280 = vmax.f32 %v1128, 0.0
      %v1281 = vmax.f32 %v1181, 0.0
      %v1282 = vmax.f32 %v813, 0.0
      %v1283 = vmax.f32 %v866, 0.0
      %v1284 = vmax.f32 %v919, 0.0
      %v1285 = vmax.f32 %v972, 0.0
      %v1286 = vmax.f32 %v1025, 0.0
      %v1287 = vmax.f32 %v1078, 0.0
      %v1288 = vmax.f32 %v1131, 0.0
      %v1289 = vmax.f32 %v1184, 0.0
      %v1290 = vmax.f32 %v815, 0.0
      %v1291 = vmax.f32 %v868, 0.0
      %v1292 = vmax.f32 %v921, 0.0
      %v1293 = vmax.f32 %v974, 0.0
      %v1294 = vmax.f32 %v1027, 0.0
      %v1295 = vmax.f32 %v1080, 0.0
      %v1296 = vmax.f32 %v1133, 0.0
      %v1297 = vmax.f32 %v1186, 0.0
      %v1298 = vmax.f32 %v818, 0.0
      %v1299 = vmax.f32 %v871, 0.0
      %v1300 = vmax.f32 %v924, 0.0
      %v1301 = vmax.f32 %v977, 0.0
      %v1302 = vmax.f32 %v1030, 0.0
      %v1303 = vmax.f32 %v1083, 0.0
      %v1304 = vmax.f32 %v1136, 0.0
      %v1305 = vmax.f32 %v1189, 0.0
      %v1306 = vmax.f32 %v820, 0.0
      %v1307 = vmax.f32 %v873, 0.0
      %v1308 = vmax.f32 %v926, 0.0
      %v1309 = vmax.f32 %v979, 0.0
      %v1310 = vmax.f32 %v1032, 0.0
      %v1311 = vmax.f32 %v1085, 0.0
      %v1312 = vmax.f32 %v1138, 0.0
      %v1313 = vmax.f32 %v1191, 0.0
      %v1314 = vmax.f32 %v823, 0.0
      %v1315 = vmax.f32 %v876, 0.0
      %v1316 = vmax.f32 %v929, 0.0
      %v1317 = vmax.f32 %v982, 0.0
      %v1318 = vmax.f32 %v1035, 0.0
      %v1319 = vmax.f32 %v1088, 0.0
      %v1320 = vmax.f32 %v1141, 0.0
      %v1321 = vmax.f32 %v1194, 0.0
      %v1322 = vmax.f32 %v825, 0.0
      %v1323 = vmax.f32 %v878, 0.0
      %v1324 = vmax.f32 %v931, 0.0
      %v1325 = vmax.f32 %v984, 0.0
      %v1326 = vmax.f32 %v1037, 0.0
      %v1327 = vmax.f32 %v1090, 0.0
      %v1328 = vmax.f32 %v1143, 0.0
      %v1329 = vmax.f32 %v1196, 0.0
      %v1330 = vmax.f32 %v828, 0.0
      %v1331 = vmax.f32 %v881, 0.0
      %v1332 = vmax.f32 %v934, 0.0
      %v1333 = vmax.f32 %v987, 0.0
      %v1334 = vmax.f32 %v1040, 0.0
      %v1335 = vmax.f32 %v1093, 0.0
      %v1336 = vmax.f32 %v1146, 0.0
      %v1337 = vmax.f32 %v1199, 0.0
      %v1338 = vadd.f32 %v1202, %v1210
      %v1339 = vadd.f32 %v1338, %v1218
      %v1340 = vadd.f32 %v1339, %v1226
      %v1341 = vadd.f32 %v1340, %v1234
      %v1342 = vadd.f32 %v1341, %v1242
      %v1343 = vadd.f32 %v1342, %v1250
      %v1344 = vadd.f32 %v1343, %v1258
      %v1345 = vadd.f32 %v1344, %v1266
      %v1346 = vrot.slane %v1345, 4
      %v1347 = vadd.f32 %v1345, %v1346
      %v1348 = vrot.slane %v1347, 2
      %v1349 = vadd.f32 %v1347, %v1348
      %v1350 = vrot.slane %v1349, 1
      %v1351 = vadd.f32 %v1349, %v1350
      %v1352 = vadd.f32 %v1203, %v1211
      %v1353 = vadd.f32 %v1352, %v1219
      %v1354 = vadd.f32 %v1353, %v1227
      %v1355 = vadd.f32 %v1354, %v1235
      %v1356 = vadd.f32 %v1355, %v1243
      %v1357 = vadd.f32 %v1356, %v1251
      %v1358 = vadd.f32 %v1357, %v1259
      %v1359 = vadd.f32 %v1358, %v1267
      %v1360 = vrot.slane %v1359, 4
      %v1361 = vadd.f32 %v1359, %v1360
      %v1362 = vrot.slane %v1361, 2
      %v1363 = vadd.f32 %v1361, %v1362
      %v1364 = vrot.slane %v1363, 1
      %v1365 = vadd.f32 %v1363, %v1364
      %v1366 = vadd.f32 %v1204, %v1212
      %v1367 = vadd.f32 %v1366, %v1220
      %v1368 = vadd.f32 %v1367, %v1228
      %v1369 = vadd.f32 %v1368, %v1236
      %v1370 = vadd.f32 %v1369, %v1244
      %v1371 = vadd.f32 %v1370, %v1252
      %v1372 = vadd.f32 %v1371, %v1260
      %v1373 = vadd.f32 %v1372, %v1268
      %v1374 = vrot.slane %v1373, 4
      %v1375 = vadd.f32 %v1373, %v1374
      %v1376 = vrot.slane %v1375, 2
      %v1377 = vadd.f32 %v1375, %v1376
      %v1378 = vrot.slane %v1377, 1
      %v1379 = vadd.f32 %v1377, %v1378
      %v1380 = vadd.f32 %v1205, %v1213
      %v1381 = vadd.f32 %v1380, %v1221
      %v1382 = vadd.f32 %v1381, %v1229
      %v1383 = vadd.f32 %v1382, %v1237
      %v1384 = vadd.f32 %v1383, %v1245
      %v1385 = vadd.f32 %v1384, %v1253
      %v1386 = vadd.f32 %v1385, %v1261
      %v1387 = vadd.f32 %v1386, %v1269
      %v1388 = vrot.slane %v1387, 4
      %v1389 = vadd.f32 %v1387, %v1388
      %v1390 = vrot.slane %v1389, 2
      %v1391 = vadd.f32 %v1389, %v1390
      %v1392 = vrot.slane %v1391, 1
      %v1393 = vadd.f32 %v1391, %v1392
      %v1394 = vadd.f32 %v1206, %v1214
      %v1395 = vadd.f32 %v1394, %v1222
      %v1396 = vadd.f32 %v1395, %v1230
      %v1397 = vadd.f32 %v1396, %v1238
      %v1398 = vadd.f32 %v1397, %v1246
      %v1399 = vadd.f32 %v1398, %v1254
      %v1400 = vadd.f32 %v1399, %v1262
      %v1401 = vadd.f32 %v1400, %v1270
      %v1402 = vrot.slane %v1401, 4
      %v1403 = vadd.f32 %v1401, %v1402
      %v1404 = vrot.slane %v1403, 2
      %v1405 = vadd.f32 %v1403, %v1404
      %v1406 = vrot.slane %v1405, 1
      %v1407 = vadd.f32 %v1405, %v1406
      %v1408 = vadd.f32 %v1207, %v1215
      %v1409 = vadd.f32 %v1408, %v1223
      %v1410 = vadd.f32 %v1409, %v1231
      %v1411 = vadd.f32 %v1410, %v1239
      %v1412 = vadd.f32 %v1411, %v1247
      %v1413 = vadd.f32 %v1412, %v1255
      %v1414 = vadd.f32 %v1413, %v1263
      %v1415 = vadd.f32 %v1414, %v1271
      %v1416 = vrot.slane %v1415, 4
      %v1417 = vadd.f32 %v1415, %v1416
      %v1418 = vrot.slane %v1417, 2
      %v1419 = vadd.f32 %v1417, %v1418
      %v1420 = vrot.slane %v1419, 1
      %v1421 = vadd.f32 %v1419, %v1420
      %v1422 = vadd.f32 %v1208, %v1216
      %v1423 = vadd.f32 %v1422, %v1224
      %v1424 = vadd.f32 %v1423, %v1232
      %v1425 = vadd.f32 %v1424, %v1240
      %v1426 = vadd.f32 %v1425, %v1248
      %v1427 = vadd.f32 %v1426, %v1256
      %v1428 = vadd.f32 %v1427, %v1264
      %v1429 = vadd.f32 %v1428, %v1272
      %v1430 = vrot.slane %v1429, 4
      %v1431 = vadd.f32 %v1429, %v1430
      %v1432 = vrot.slane %v1431, 2
      %v1433 = vadd.f32 %v1431, %v1432
      %v1434 = vrot.slane %v1433, 1
      %v1435 = vadd.f32 %v1433, %v1434
      %v1436 = vadd.f32 %v1209, %v1217
      %v1437 = vadd.f32 %v1436, %v1225
      %v1438 = vadd.f32 %v1437, %v1233
      %v1439 = vadd.f32 %v1438, %v1241
      %v1440 = vadd.f32 %v1439, %v1249
      %v1441 = vadd.f32 %v1440, %v1257
      %v1442 = vadd.f32 %v1441, %v1265
      %v1443 = vadd.f32 %v1442, %v1273
      %v1444 = vrot.slane %v1443, 4
      %v1445 = vadd.f32 %v1443, %v1444
      %v1446 = vrot.slane %v1445, 2
      %v1447 = vadd.f32 %v1445, %v1446
      %v1448 = vrot.slane %v1447, 1
      %v1449 = vadd.f32 %v1447, %v1448
      %v1450 = vadd.f32 %v1274, %v1282
      %v1451 = vadd.f32 %v1450, %v1290
      %v1452 = vadd.f32 %v1451, %v1298
      %v1453 = vadd.f32 %v1452, %v1306
      %v1454 = vadd.f32 %v1453, %v1314
      %v1455 = vadd.f32 %v1454, %v1322
      %v1456 = vadd.f32 %v1455, %v1330
      %v1457 = vrot.slane %v1456, 4
      %v1458 = vadd.f32 %v1456, %v1457
      %v1459 = vrot.slane %v1458, 2
      %v1460 = vadd.f32 %v1458, %v1459
      %v1461 = vrot.slane %v1460, 1
      %v1462 = vadd.f32 %v1460, %v1461
      %v1463 = vadd.f32 %v1275, %v1283
      %v1464 = vadd.f32 %v1463, %v1291
      %v1465 = vadd.f32 %v1464, %v1299
      %v1466 = vadd.f32 %v1465, %v1307
      %v1467 = vadd.f32 %v1466, %v1315
      %v1468 = vadd.f32 %v1467, %v1323
      %v1469 = vadd.f32 %v1468, %v1331
      %v1470 = vrot.slane %v1469, 4
      %v1471 = vadd.f32 %v1469, %v1470
      %v1472 = vrot.slane %v1471, 2
      %v1473 = vadd.f32 %v1471, %v1472
      %v1474 = vrot.slane %v1473, 1
      %v1475 = vadd.f32 %v1473, %v1474
      %v1476 = vadd.f32 %v1276, %v1284
      %v1477 = vadd.f32 %v1476, %v1292
      %v1478 = vadd.f32 %v1477, %v1300
      %v1479 = vadd.f32 %v1478, %v1308
      %v1480 = vadd.f32 %v1479, %v1316
      %v1481 = vadd.f32 %v1480, %v1324
      %v1482 = vadd.f32 %v1481, %v1332
      %v1483 = vrot.slane %v1482, 4
      %v1484 = vadd.f32 %v1482, %v1483
      %v1485 = vrot.slane %v1484, 2
      %v1486 = vadd.f32 %v1484, %v1485
      %v1487 = vrot.slane %v1486, 1
      %v1488 = vadd.f32 %v1486, %v1487
      %v1489 = vadd.f32 %v1277, %v1285
      %v1490 = vadd.f32 %v1489, %v1293
      %v1491 = vadd.f32 %v1490, %v1301
      %v1492 = vadd.f32 %v1491, %v1309
      %v1493 = vadd.f32 %v1492, %v1317
      %v1494 = vadd.f32 %v1493, %v1325
      %v1495 = vadd.f32 %v1494, %v1333
      %v1496 = vrot.slane %v1495, 4
      %v1497 = vadd.f32 %v1495, %v1496
      %v1498 = vrot.slane %v1497, 2
      %v1499 = vadd.f32 %v1497, %v1498
      %v1500 = vrot.slane %v1499, 1
      %v1501 = vadd.f32 %v1499, %v1500
      %v1502 = vadd.f32 %v1278, %v1286
      %v1503 = vadd.f32 %v1502, %v1294
      %v1504 = vadd.f32 %v1503, %v1302
      %v1505 = vadd.f32 %v1504, %v1310
      %v1506 = vadd.f32 %v1505, %v1318
      %v1507 = vadd.f32 %v1506, %v1326
      %v1508 = vadd.f32 %v1507, %v1334
      %v1509 = vrot.slane %v1508, 4
      %v1510 = vadd.f32 %v1508, %v1509
      %v1511 = vrot.slane %v1510, 2
      %v1512 = vadd.f32 %v1510, %v1511
      %v1513 = vrot.slane %v1512, 1
      %v1514 = vadd.f32 %v1512, %v1513
      %v1515 = vadd.f32 %v1279, %v1287
      %v1516 = vadd.f32 %v1515, %v1295
      %v1517 = vadd.f32 %v1516, %v1303
      %v1518 = vadd.f32 %v1517, %v1311
      %v1519 = vadd.f32 %v1518, %v1319
      %v1520 = vadd.f32 %v1519, %v1327
      %v1521 = vadd.f32 %v1520, %v1335
      %v1522 = vrot.slane %v1521, 4
      %v1523 = vadd.f32 %v1521, %v1522
      %v1524 = vrot.slane %v1523, 2
      %v1525 = vadd.f32 %v1523, %v1524
      %v1526 = vrot.slane %v1525, 1
      %v1527 = vadd.f32 %v1525, %v1526
      %v1528 = vadd.f32 %v1280, %v1288
      %v1529 = vadd.f32 %v1528, %v1296
      %v1530 = vadd.f32 %v1529, %v1304
      %v1531 = vadd.f32 %v1530, %v1312
      %v1532 = vadd.f32 %v1531, %v1320
      %v1533 = vadd.f32 %v1532, %v1328
      %v1534 = vadd.f32 %v1533, %v1336
      %v1535 = vrot.slane %v1534, 4
      %v1536 = vadd.f32 %v1534, %v1535
      %v1537 = vrot.slane %v1536, 2
      %v1538 = vadd.f32 %v1536, %v1537
      %v1539 = vrot.slane %v1538, 1
      %v1540 = vadd.f32 %v1538, %v1539
      %v1541 = vadd.f32 %v1281, %v1289
      %v1542 = vadd.f32 %v1541, %v1297
      %v1543 = vadd.f32 %v1542, %v1305
      %v1544 = vadd.f32 %v1543, %v1313
      %v1545 = vadd.f32 %v1544, %v1321
      %v1546 = vadd.f32 %v1545, %v1329
      %v1547 = vadd.f32 %v1546, %v1337
      %v1548 = vrot.slane %v1547, 4
      %v1549 = vadd.f32 %v1547, %v1548
      %v1550 = vrot.slane %v1549, 2
      %v1551 = vadd.f32 %v1549, %v1550
      %v1552 = vrot.slane %v1551, 1
      %v1553 = vadd.f32 %v1551, %v1552
      %v1554 = vsub.f32 %v1351, %v1462
      %v1555 = vsub.f32 %v1365, %v1475
      %v1556 = vsub.f32 %v1379, %v1488
      %v1557 = vsub.f32 %v1393, %v1501
      %v1558 = vsub.f32 %v1407, %v1514
      %v1559 = vsub.f32 %v1421, %v1527
      %v1560 = vsub.f32 %v1435, %v1540
      %v1561 = vsub.f32 %v1449, %v1553
      %v1562 = vstv %s552
      %v1563 = vadd.f32 %v1554, %v1562
      %v1564 = vadd.f32 %v1555, %v1562
      %v1565 = vadd.f32 %v1556, %v1562
      %v1566 = vadd.f32 %v1557, %v1562
      %v1567 = vadd.f32 %v1558, %v1562
      %v1568 = vadd.f32 %v1559, %v1562
      %v1569 = vadd.f32 %v1560, %v1562
      %v1570 = vadd.f32 %v1561, %v1562
      %v1571 = vand.u32 2147483647, %v1563
      %v1572 = vand.u32 2147483647, %v1564
      %v1573 = vand.u32 2147483647, %v1565
      %v1574 = vand.u32 2147483647, %v1566
      %v1575 = vand.u32 2147483647, %v1567
      %v1576 = vand.u32 2147483647, %v1568
      %v1577 = vand.u32 2147483647, %v1569
      %v1578 = vand.u32 2147483647, %v1570
      %v1579 = vsub.f32 0.0, %v1571
      %v1580 = vsub.f32 0.0, %v1572
      %v1581 = vsub.f32 0.0, %v1573
      %v1582 = vsub.f32 0.0, %v1574
      %v1583 = vsub.f32 0.0, %v1575
      %v1584 = vsub.f32 0.0, %v1576
      %v1585 = vsub.f32 0.0, %v1577
      %v1586 = vsub.f32 0.0, %v1578
      %v1587 = vmul.f32 %v1579, 1.442695
      %v1588 = vpow.pop %v1587
      %v1589 = vmul.f32 %v1580, 1.442695
      %v1590 = vpow.pop %v1589
      %v1591 = vmul.f32 %v1581, 1.442695
      %v1592 = vpow.pop %v1591
      %v1593 = vmul.f32 %v1582, 1.442695
      %v1594 = vpow.pop %v1593
      %v1595 = vmul.f32 %v1583, 1.442695
      %v1596 = vpow.pop %v1595
      %v1597 = vmul.f32 %v1584, 1.442695
      %v1598 = vpow.pop %v1597
      %v1599 = vmul.f32 %v1585, 1.442695
      %v1600 = vpow.pop %v1599
      %v1601 = vmul.f32 %v1586, 1.442695
      %v1602 = vpow.pop %v1601
      %v1603 = vadd.f32 %v1588, 1.0
      %v1604 = vadd.f32 %v1590, 1.0
      %v1605 = vadd.f32 %v1592, 1.0
      %v1606 = vadd.f32 %v1594, 1.0
      %v1607 = vadd.f32 %v1596, 1.0
      %v1608 = vadd.f32 %v1598, 1.0
      %v1609 = vadd.f32 %v1600, 1.0
      %v1610 = vadd.f32 %v1602, 1.0
      %v1611 = vrcp.pop %v1603
      %v1612 = vrcp.pop %v1604
      %v1613 = vrcp.pop %v1605
      %v1614 = vrcp.pop %v1606
      %v1615 = vrcp.pop %v1607
      %v1616 = vrcp.pop %v1608
      %v1617 = vrcp.pop %v1609
      %v1618 = vrcp.pop %v1610
      %vm1619 = vcmp.ge.f32.partialorder %v1563, 0.0
      %vm1620 = vcmp.ge.f32.partialorder %v1564, 0.0
      %vm1621 = vcmp.ge.f32.partialorder %v1565, 0.0
      %vm1622 = vcmp.ge.f32.partialorder %v1566, 0.0
      %vm1623 = vcmp.ge.f32.partialorder %v1567, 0.0
      %vm1624 = vcmp.ge.f32.partialorder %v1568, 0.0
      %vm1625 = vcmp.ge.f32.partialorder %v1569, 0.0
      %vm1626 = vcmp.ge.f32.partialorder %v1570, 0.0
      %v1627 = vmul.f32 %v1588, %v1611
      %v1628 = vmul.f32 %v1590, %v1612
      %v1629 = vmul.f32 %v1592, %v1613
      %v1630 = vmul.f32 %v1594, %v1614
      %v1631 = vmul.f32 %v1596, %v1615
      %v1632 = vmul.f32 %v1598, %v1616
      %v1633 = vmul.f32 %v1600, %v1617
      %v1634 = vmul.f32 %v1602, %v1618
      %v1635 = vsel %vm1619, %v1611, %v1627
      %v1636 = vsel %vm1620, %v1612, %v1628
      %v1637 = vsel %vm1621, %v1613, %v1629
      %v1638 = vsel %vm1622, %v1614, %v1630
      %v1639 = vsel %vm1623, %v1615, %v1631
      %v1640 = vsel %vm1624, %v1616, %v1632
      %v1641 = vsel %vm1625, %v1617, %v1633
      %v1642 = vsel %vm1626, %v1618, %v1634
      %vm1643 = vcmask 1040384
      %v1644 = vsel %vm1643, %v1635, %v1639
      %v1645 = vsel %vm1643, %v1636, %v1640
      %v1646 = vsel %vm1643, %v1637, %v1641
      %v1647 = vsel %vm1643, %v1638, %v1642
      %v1648 = vpack.c.bf16 %v1645, %v1644
      %v1649 = vpack.c.bf16 %v1647, %v1646
      %v1652 = vrot.slane %v1648, 3
      %v1653 = vrot.slane %v1649, 6
      %v1654 = vrot.slane %v1649, 1
      %v1657 = vsel %vm1643, %v1648, %v1652
      %vm1658 = vcmask 1042434
      %v1661 = vsel %vm1658, %v1653, %v1654
      %vm1662 = vcmask 1041408
      %v1663 = vsel %vm1662, %v1657, %v1661
      %1665 = vst [vmem:[%s500] sm:$0xf] %v1663
      %v1666 = vmax.f32 %v1563, 0.0
      %v1667 = vmax.f32 %v1564, 0.0
      %v1668 = vmax.f32 %v1565, 0.0
      %v1669 = vmax.f32 %v1566, 0.0
      %v1670 = vmax.f32 %v1567, 0.0
      %v1671 = vmax.f32 %v1568, 0.0
      %v1672 = vmax.f32 %v1569, 0.0
      %v1673 = vmax.f32 %v1570, 0.0
      %v1674 = vlog2.pop %v1603
      %v1675 = vmul.f32 %v1674, 0.6931472
      %v1676 = vlog2.pop %v1604
      %v1677 = vmul.f32 %v1676, 0.6931472
      %v1678 = vlog2.pop %v1605
      %v1679 = vmul.f32 %v1678, 0.6931472
      %v1680 = vlog2.pop %v1606
      %v1681 = vmul.f32 %v1680, 0.6931472
      %v1682 = vlog2.pop %v1607
      %v1683 = vmul.f32 %v1682, 0.6931472
      %v1684 = vlog2.pop %v1608
      %v1685 = vmul.f32 %v1684, 0.6931472
      %v1686 = vlog2.pop %v1609
      %v1687 = vmul.f32 %v1686, 0.6931472
      %v1688 = vlog2.pop %v1610
      %v1689 = vmul.f32 %v1688, 0.6931472
      %v1690 = vadd.f32 %v1666, %v1675
      %v1691 = vadd.f32 %v1667, %v1677
      %v1692 = vadd.f32 %v1668, %v1679
      %v1693 = vadd.f32 %v1669, %v1681
      %v1694 = vadd.f32 %v1670, %v1683
      %v1695 = vadd.f32 %v1671, %v1685
      %v1696 = vadd.f32 %v1672, %v1687
      %v1697 = vadd.f32 %v1673, %v1689
      %v1698 = vsub.f32 %v1690, %v1563
      %v1699 = vsub.f32 %v1691, %v1564
      %v1700 = vsub.f32 %v1692, %v1565
      %v1701 = vsub.f32 %v1693, %v1566
      %v1702 = vld [vmem:[%s489] sm:$0xf]
      %v1703 = vsel %vm1643, %v1698, %v1694
      %v1704 = vsel %vm1643, %v1699, %v1695
      %v1705 = vsel %vm1643, %v1700, %v1696
      %v1706 = vsel %vm1643, %v1701, %v1697
      %v1708 = vperm.slane %v1702, 0
      %v1709 = vperm.slane %v1702, 1
      %v1710 = vperm.slane %v1702, 2
      %v1711 = vperm.slane %v1702, 3
      %v1716 = vmul.f32 %v1703, %v1708
      %v1717 = vmul.f32 %v1704, %v1709
      %v1718 = vmul.f32 %v1705, %v1710
      %v1719 = vmul.f32 %v1706, %v1711
      %v1720 = vadd.f32 %v1716, 0.0
      %v1721 = vadd.f32 %v1717, 0.0
      %v1722 = vadd.f32 %v1718, 0.0
      %v1723 = vadd.f32 %v1719, 0.0
      %v1724 = vld [vmem:[%s511] sm:$0xff]
      %v1729 = vrot.slane %v1721, 6
      %v1730 = vrot.slane %v1722, 4
      %v1731 = vrot.slane %v1723, 2
      %v1732 = vsel %vm1662, %v1720, %v1729
      %vm1733 = vcmask 1045508
      %v1734 = vsel %vm1733, %v1730, %v1731
      %v1735 = vsel %vm753, %v1732, %v1734
      %v1737 = vadd.f32 %v1724, %v1735
      %1738 = vst [vmem:[%s511] sm:$0xff] %v1737
      %s1739 = sadd.s32 %s27, %s28
      %s1740 = smul.u32 4, %s1739
      %p1741 = scmp.lt.s32.totalorder %s26, 1
      %s1742 = scalar_select %p1741, %s26, 1
      %p1743 = scmp.lt.s32.totalorder %s1740, 3
      %s1744 = scalar_select %p1743, %s1740, 3
      %s1745 = smul.addr %s1742, 4
      %s1746 = sadd.s32 %s1744, %s1745
      %s1747 = scalar_lea.vmem %s7, %s1746
      %p1748 = scmp.lt.s32.totalorder %s26, 1
      %s1749 = scalar_select %p1748, %s26, 1
      %p1750 = scmp.lt.s32.totalorder %s27, 0
      %s1751 = scalar_select %p1750, %s27, 0
      %s1752 = smul.addr %s1751, 4
      %s1753 = smul.addr %s1749, 4
      %s1754 = sadd.s32 %s1752, %s1753
      %s1755 = smul.addr %s1754, 2
      %s1756 = scalar_lea.vmem %s8, %s1755
      // Predicated region
      $region53: #{rejectnet3d_forward.1} parent=47 // pred_check
        %p1757 = pneg %p245
      $region54: #{rejectnet3d_forward.1} parent=47 // pred_check_branch
        %1759 = sbr.rel (%p1757) target = $region56
      $region55: #{rejectnet3d_forward.1} parent=47 // pred_region
        %s1760 = sadd.s32 %s27, %s28
        %s1761 = smul.u32 4, %s1760
      $region56: #{rejectnet3d_forward.1} parent=47 // pred_fallthru
        _
      // Predicated region
      $region57: #{rejectnet3d_forward.1} parent=47 // pred_check
        %p1762 = pneg %p273
      $region58: #{rejectnet3d_forward.1} parent=47 // pred_check_branch
        %1764 = sbr.rel (%p1762) target = $region60
      $region59: #{rejectnet3d_forward.1} parent=47 // pred_region
        _
      $region60: #{rejectnet3d_forward.1} parent=47 // pred_fallthru
        _
    $region48: #{rejectnet3d_forward.1} parent=5 // pred_fallthru
      _
    %p1765 = scmp.le.s32.totalorder 2, %s16
    // Predicated region
    $region61: #{rejectnet3d_forward.1} parent=5 // pred_check
      %p1766 = pneg %p1765
    $region62: #{rejectnet3d_forward.1} parent=5 // pred_check_branch
      %1768 = sbr.rel (%p1766) target = $region64
    $region63: #{rejectnet3d_forward.1} parent=5 // pred_region
      %s1769 = ssub.s32 %s16, 2
      // Predicated region
      $region65: #{rejectnet3d_forward.1} parent=63 // pred_check
        %p1770 = pneg %p251
      $region66: #{rejectnet3d_forward.1} parent=63 // pred_check_branch
        %1772 = sbr.rel (%p1770) target = $region68
      $region67: #{rejectnet3d_forward.1} parent=63 // pred_region
        %s1773 = sadd.s32 %s30, %s31
        %s1774 = smul.u32 4, %s1773
        %p1775 = scmp.lt.s32.totalorder %s29, 1
        %s1776 = scalar_select %p1775, %s29, 1
        %p1777 = scmp.lt.s32.totalorder %s1774, 3
        %s1778 = scalar_select %p1777, %s1774, 3
        %s1779 = smul.addr %s1776, 4
        %s1780 = sadd.s32 %s1778, %s1779
        %s1781 = scalar_lea.vmem %s7, %s1780
      $region68: #{rejectnet3d_forward.1} parent=63 // pred_fallthru
        _
      // Predicated region
      $region69: #{rejectnet3d_forward.1} parent=63 // pred_check
        %p1782 = pneg %p279
      $region70: #{rejectnet3d_forward.1} parent=63 // pred_check_branch
        %1784 = sbr.rel (%p1782) target = $region72
      $region71: #{rejectnet3d_forward.1} parent=63 // pred_region
        %p1785 = scmp.lt.s32.totalorder %s29, 1
        %s1786 = scalar_select %p1785, %s29, 1
        %p1787 = scmp.lt.s32.totalorder %s30, 0
        %s1788 = scalar_select %p1787, %s30, 0
        %s1789 = smul.addr %s1788, 4
        %s1790 = smul.addr %s1786, 4
        %s1791 = sadd.s32 %s1789, %s1790
        %s1792 = smul.addr %s1791, 2
        %s1793 = scalar_lea.vmem %s8, %s1792
      $region72: #{rejectnet3d_forward.1} parent=63 // pred_fallthru
        _
    $region64: #{rejectnet3d_forward.1} parent=5 // pred_fallthru
      _
  $region6: #{rejectnet3d_forward.1} parent=0 // loop_footer
    %s20 = sadd.s32 1, %s16
  $region7: #{rejectnet3d_forward.1} parent=0 // loop_footer_branch
    %15 = sbr.rel target = $region3
  $region8: #{rejectnet3d_forward.1} parent=0 // loop_exit
    _

</llo_original>
